<compile_context>
chip_gen: v7x
topology: tpu7x:2x2x1
jax: 0.10.0
libtpu: 0.0.40
codegen_flags: <defaults>
</compile_context>

<pallas_src>
import numpy as np
import jax
import jax.numpy as jnp
from jax.experimental import pallas as pl
from jax.experimental.pallas import tpu as pltpu


def bilstm_kernel(x_ref, wih_ref, whh_ref, b_ref,
                  out_ref, hn_ref, cn_ref, gx_ref):
    S = x_ref.shape[0]
    H2 = whh_ref.shape[0]          # 2H  (fwd | bwd)
    H = H2 // 2

    # Prologue: single fused bf16 (S, 2E) @ (2E, 8H) MXU matmul.  wih is block-structured
    # (top E rows -> forward gate columns from x[s]; bottom E rows -> backward gate columns
    # from x[S-1-s]), so gx row s is already the merged [fwd | bwd] gate pre-activation.
    # Column layout: gate-major (i, f, g, o), each gate slab 2H wide as [fwd | bwd].
    gx_ref[...] = jnp.dot(x_ref[...], wih_ref[...],
                          preferred_element_type=jnp.float32) + b_ref[...]

    # Hoist W_hh into vregs only while it fits comfortably; at H >= 64 the (2H, 8H) bf16
    # tile would eat most of the 64-vreg file and force spills inside the unrolled body.
    hoist_whh = H < 64
    whh_hoisted = whh_ref[...] if hoist_whh else None

    zeros = jnp.zeros((1, H2), jnp.float32)    # init_hidden(): zero h_0 / c_0

    def sigmoid(z):
        # One EUP op (tanh) instead of exp + reciprocal.
        return 0.5 * (jnp.tanh(0.5 * z) + 1.0)

    def body(s, carry):
        h, c = carry                                            # (1, 2H) f32: [fwd | bwd]
        whh = whh_hoisted if hoist_whh else whh_ref[...]
        # Single merged gate row per step + one recurrent MXU matmul for both directions.
        gates = gx_ref[pl.ds(s, 1), :] + jnp.dot(
            h.astype(jnp.bfloat16), whh, preferred_element_type=jnp.float32)
        # PyTorch gate order i, f, g, o; each slab is (1, 2H) = [fwd | bwd].
        i = sigmoid(gates[:, 0:H2])
        f = sigmoid(gates[:, H2:2 * H2])
        g = jnp.tanh(gates[:, 2 * H2:3 * H2])
        o = sigmoid(gates[:, 3 * H2:4 * H2])
        c_new = f * c + i * g
        h_new = o * jnp.tanh(c_new)
        # One (1, 2H) store per step; the backward half lands time-reversed and is
        # flipped back in the wrapper.
        out_ref[pl.ds(s, 1), :] = h_new
        return (h_new, c_new)

    h_fin, c_fin = jax.lax.fori_loop(0, S, body, (zeros, zeros),
                                     unroll=min(S, 8))

    # After the fused loop: h_fin = [h_f(t=S-1) | h_b(t=0)] == PyTorch h_n layout.
    hn_ref[...] = h_fin
    cn_ref[...] = c_fin


def pack_bilstm_params(W_ih_f, W_hh_f, b_ih_f, b_hh_f,
                       W_ih_b, W_hh_b, b_ih_b, b_hh_b):
    """Repack PyTorch-layout LSTM weights into the fused/interleaved kernel layout.

    Column layout (width 8H): column c = gate*2H + dir*H + unit, PyTorch gate order
    (i, f, g, o), dir 0 = forward, 1 = backward.
    W_ih is block-structured over a (2E)-row input: rows [0, E) are driven by x[t]
    (forward columns), rows [E, 2E) by x[S-1-t] (backward columns).  W_hh is
    block-diagonal over h = [h_f | h_b].
    """
    H = W_hh_f.shape[1]
    E = W_ih_f.shape[1]

    def interleave_cols(a_f, a_b):                 # a_*: (rows, 4H) -> (rows, 8H)
        rows = a_f.shape[0]
        return jnp.stack([a_f.reshape(rows, 4, H),
                          a_b.reshape(rows, 4, H)], axis=2).reshape(rows, 8 * H)

    z_e = jnp.zeros((E, 4 * H), W_ih_f.dtype)
    wih_cat = jnp.concatenate(
        [interleave_cols(W_ih_f.T, z_e),           # rows 0..E-1  : forward columns
         interleave_cols(z_e, W_ih_b.T)], axis=0)  # rows E..2E-1 : backward columns

    z_h = jnp.zeros((H, 4 * H), W_hh_f.dtype)
    whh_cat = jnp.concatenate(
        [interleave_cols(W_hh_f.T, z_h),           # rows drive from h_f
         interleave_cols(z_h, W_hh_b.T)], axis=0)  # rows drive from h_b

    b_cat = interleave_cols((b_ih_f + b_hh_f)[None, :],
                            (b_ih_b + b_hh_b)[None, :])            # (1, 8H)

    return {"wih": wih_cat.astype(jnp.bfloat16),
            "whh": whh_cat.astype(jnp.bfloat16),
            "b": b_cat.astype(jnp.float32),
            "hidden": int(H)}


def code_encoder_forward(code, vecs, params):
    """Mirrors CodeEncoder.forward: embedding -> unsqueeze(1) -> bidirectional LSTM."""
    H = params["hidden"]
    # Embedding lookup (glue): nn.Embedding.from_pretrained(vecs)(code)
    x = jnp.take(vecs, code, axis=0).astype(jnp.float32)           # (S, E)
    S, _ = x.shape
    if S == 0:  # degenerate empty sequence: nothing to run
        zero = jnp.zeros((2, 1, H), jnp.float32)
        return jnp.zeros((0, 1, 2 * H), jnp.float32), (zero, zero)

    # Pre-merge the two time directions in the wrapper (cheap XLA glue): row s of
    # x_merged = [x[s] | x[S-1-s]], so the kernel's single prologue matmul already
    # produces merged gate rows and the recurrence reads exactly one row per step.
    x_merged = jnp.concatenate([x, x[::-1]], axis=-1).astype(jnp.bfloat16)   # (S, 2E)

    vmem = pl.BlockSpec(memory_space=pltpu.MemorySpace.VMEM)
    raw, hn, cn = pl.pallas_call(
        bilstm_kernel,
        out_shape=(jax.ShapeDtypeStruct((S, 2 * H), jnp.float32),
                   jax.ShapeDtypeStruct((1, 2 * H), jnp.float32),
                   jax.ShapeDtypeStruct((1, 2 * H), jnp.float32)),
        in_specs=[vmem] * 4,
        out_specs=(vmem, vmem, vmem),
        scratch_shapes=[pltpu.VMEM((S, 8 * H), jnp.float32)],
        compiler_params=pltpu.CompilerParams(vmem_limit_bytes=48 * 1024 * 1024),
    )(x_merged, params["wih"], params["whh"], params["b"])

    # Backward half was stored in reversed time order -> flip it back (cheap glue),
    # then present PyTorch's nn.LSTM (seq-first, batch=1) return convention.
    output = jnp.concatenate([raw[:, :H], raw[::-1, H:]], axis=-1).reshape(S, 1, 2 * H)
    h_n = hn.reshape(2, 1, H)
    c_n = cn.reshape(2, 1, H)
    return output, (h_n, c_n)


# ------------------------- pure numpy reference --------------------------------
def _sigmoid(z):
    return 1.0 / (1.0 + np.exp(-z))


def _np_lstm_dir(x, W_ih, W_hh, b_ih, b_hh, reverse):
    S, _ = x.shape
    H = W_hh.shape[1]
    h = np.zeros((H,), np.float32)
    c = np.zeros((H,), np.float32)
    outs = np.zeros((S, H), np.float32)
    order = range(S - 1, -1, -1) if reverse else range(S)
    for t in order:
        gates = W_ih @ x[t] + b_ih + W_hh @ h + b_hh
        i = _sigmoid(gates[0:H])
        f = _sigmoid(gates[H:2 * H])
        g = np.tanh(gates[2 * H:3 * H])
        o = _sigmoid(gates[3 * H:4 * H])
        c = f * c + i * g
        h = o * np.tanh(c)
        outs[t] = h
    return outs, h, c


if __name__ == "__main__":
    V, E, H, S = 16, 32, 32, 8   # vocab, embed dim, hidden_sz, seq len (batch fixed at 1)
    key = jax.random.PRNGKey(0)
    keys = jax.random.split(key, 10)

    # Pretrained embedding table (vecs) and integer code sequence.
    vecs = jax.random.normal(keys[0], (V, E), dtype=jnp.float32)
    code = jax.random.randint(keys[1], (S,), 0, V, dtype=jnp.int32)

    # LSTM parameters in PyTorch layout, uniform(-1/sqrt(H), 1/sqrt(H)).
    k = 1.0 / np.sqrt(H)
    def u(kk, shape):
        return jax.random.uniform(kk, shape, jnp.float32, -k, k)

    W_ih_f = u(keys[2], (4 * H, E));  W_hh_f = u(keys[3], (4 * H, H))
    b_ih_f = u(keys[4], (4 * H,));    b_hh_f = u(keys[5], (4 * H,))
    W_ih_b = u(keys[6], (4 * H, E));  W_hh_b = u(keys[7], (4 * H, H))
    b_ih_b = u(keys[8], (4 * H,));    b_hh_b = u(keys[9], (4 * H,))

    params = pack_bilstm_params(W_ih_f, W_hh_f, b_ih_f, b_hh_f,
                                W_ih_b, W_hh_b, b_ih_b, b_hh_b)

    output, (h_n, c_n) = code_encoder_forward(code, vecs, params)
    jax.block_until_ready((output, h_n, c_n))

    # Reference check against a numpy bidirectional LSTM (bf16 MXU inputs loosen
    # numerics -> relaxed tolerances).
    x_np = np.asarray(jnp.take(vecs, code, axis=0), np.float32)
    of, hf, cf = _np_lstm_dir(x_np, np.asarray(W_ih_f), np.asarray(W_hh_f),
                              np.asarray(b_ih_f), np.asarray(b_hh_f), reverse=False)
    ob, hb, cb = _np_lstm_dir(x_np, np.asarray(W_ih_b), np.asarray(W_hh_b),
                              np.asarray(b_ih_b), np.asarray(b_hh_b), reverse=True)
    ref_out = np.concatenate([of, ob], axis=-1).reshape(S, 1, 2 * H)
    ref_hn = np.stack([hf, hb])[:, None, :]
    ref_cn = np.stack([cf, cb])[:, None, :]

    np.testing.assert_allclose(np.asarray(output), ref_out, rtol=3e-2, atol=3e-2)
    np.testing.assert_allclose(np.asarray(h_n), ref_hn, rtol=3e-2, atol=3e-2)
    np.testing.assert_allclose(np.asarray(c_n), ref_cn, rtol=3e-2, atol=3e-2)

    print("KERNEL_OK")
</pallas_src>

<mosaic_0001>
module attributes {stable_mosaic.version = 11 : i64} {
  func.func @bilstm_kernel(%arg0: memref<8x64xbf16, #tpu.memory_space<vmem>>, %arg1: memref<64x256xbf16, #tpu.memory_space<vmem>>, %arg2: memref<64x256xbf16, #tpu.memory_space<vmem>>, %arg3: memref<1x256xf32, #tpu.memory_space<vmem>>, %arg4: memref<8x64xf32, #tpu.memory_space<vmem>>, %arg5: memref<1x64xf32, #tpu.memory_space<vmem>>, %arg6: memref<1x64xf32, #tpu.memory_space<vmem>>, %arg7: memref<8x256xf32, #tpu.memory_space<vmem>>) attributes {dimension_semantics = [], scalar_prefetch = 0 : i64, scratch_operands = 1 : i64, tpu.core_type = #tpu.core_type<tc>} {
    %c0 = arith.constant 0 : index
    %c0_0 = arith.constant 0 : index
    %0 = vector.load %arg0[%c0, %c0_0] : memref<8x64xbf16, #tpu.memory_space<vmem>>, vector<8x64xbf16>
    %c0_1 = arith.constant 0 : index
    %c0_2 = arith.constant 0 : index
    %1 = vector.load %arg1[%c0_1, %c0_2] : memref<64x256xbf16, #tpu.memory_space<vmem>>, vector<64x256xbf16>
    %cst = arith.constant dense<0.000000e+00> : vector<8x256xf32>
    %2 = tpu.matmul %0, %1, %cst {dimension_numbers = #tpu.dot_dimension_numbers<[1], [0], [0], [1], [0, 0, 1, 1], [], []>} : vector<8x64xbf16>, vector<64x256xbf16>, vector<8x256xf32> -> vector<8x256xf32>
    %c0_3 = arith.constant 0 : index
    %c0_4 = arith.constant 0 : index
    %3 = vector.load %arg3[%c0_3, %c0_4] : memref<1x256xf32, #tpu.memory_space<vmem>>, vector<1x256xf32>
    %4 = vector.broadcast %3 : vector<1x256xf32> to vector<8x256xf32>
    %5 = arith.addf %2, %4 : vector<8x256xf32>
    %c0_5 = arith.constant 0 : index
    %c0_6 = arith.constant 0 : index
    %6 = vector.load %arg7[%c0_5, %c0_6] : memref<8x256xf32, #tpu.memory_space<vmem>>, vector<8x256xf32>
    tpu.vector_store %arg7[%c0_5, %c0_6], %5 {strides = array<i32>} : memref<8x256xf32, #tpu.memory_space<vmem>>, vector<8x256xf32>,
    %c0_7 = arith.constant 0 : index
    %c0_8 = arith.constant 0 : index
    %7 = vector.load %arg2[%c0_7, %c0_8] : memref<64x256xbf16, #tpu.memory_space<vmem>>, vector<64x256xbf16>
    %cst_9 = arith.constant 0.000000e+00 : f32
    %8 = vector.broadcast %cst_9 : f32 to vector<1x64xf32>
    %c0_i32 = arith.constant 0 : i32
    %9 = arith.index_cast %c0_i32 : i32 to index
    %c0_10 = arith.constant 0 : index
    %10 = vector.load %arg7[%9, %c0_10] : memref<8x256xf32, #tpu.memory_space<vmem>>, vector<1x256xf32>
    %11 = arith.truncf %8 : vector<1x64xf32> to vector<1x64xbf16>
    %cst_11 = arith.constant dense<0.000000e+00> : vector<1x256xf32>
    %12 = tpu.matmul %11, %7, %cst_11 {dimension_numbers = #tpu.dot_dimension_numbers<[1], [0], [0], [1], [0, 0, 1, 1], [], []>} : vector<1x64xbf16>, vector<64x256xbf16>, vector<1x256xf32> -> vector<1x256xf32>
    %13 = arith.addf %10, %12 : vector<1x256xf32>
    %14 = vector.extract_strided_slice %13 {offsets = [0, 0], sizes = [1, 64], strides = [1, 1]} : vector<1x256xf32> to vector<1x64xf32>
    %cst_12 = arith.constant 5.000000e-01 : f32
    %15 = vector.broadcast %cst_12 : f32 to vector<1x64xf32>
    %16 = arith.mulf %15, %14 : vector<1x64xf32>
    %17 = math.tanh %16 : vector<1x64xf32>
    %cst_13 = arith.constant 1.000000e+00 : f32
    %18 = vector.broadcast %cst_13 : f32 to vector<1x64xf32>
    %19 = arith.addf %17, %18 : vector<1x64xf32>
    %cst_14 = arith.constant 5.000000e-01 : f32
    %20 = vector.broadcast %cst_14 : f32 to vector<1x64xf32>
    %21 = arith.mulf %20, %19 : vector<1x64xf32>
    %22 = vector.extract_strided_slice %13 {offsets = [0, 64], sizes = [1, 64], strides = [1, 1]} : vector<1x256xf32> to vector<1x64xf32>
    %cst_15 = arith.constant 5.000000e-01 : f32
    %23 = vector.broadcast %cst_15 : f32 to vector<1x64xf32>
    %24 = arith.mulf %23, %22 : vector<1x64xf32>
    %25 = math.tanh %24 : vector<1x64xf32>
    %cst_16 = arith.constant 1.000000e+00 : f32
    %26 = vector.broadcast %cst_16 : f32 to vector<1x64xf32>
    %27 = arith.addf %25, %26 : vector<1x64xf32>
    %cst_17 = arith.constant 5.000000e-01 : f32
    %28 = vector.broadcast %cst_17 : f32 to vector<1x64xf32>
    %29 = arith.mulf %28, %27 : vector<1x64xf32>
    %30 = vector.extract_strided_slice %13 {offsets = [0, 128], sizes = [1, 64], strides = [1, 1]} : vector<1x256xf32> to vector<1x64xf32>
    %31 = math.tanh %30 : vector<1x64xf32>
    %32 = vector.extract_strided_slice %13 {offsets = [0, 192], sizes = [1, 64], strides = [1, 1]} : vector<1x256xf32> to vector<1x64xf32>
    %cst_18 = arith.constant 5.000000e-01 : f32
    %33 = vector.broadcast %cst_18 : f32 to vector<1x64xf32>
    %34 = arith.mulf %33, %32 : vector<1x64xf32>
    %35 = math.tanh %34 : vector<1x64xf32>
    %cst_19 = arith.constant 1.000000e+00 : f32
    %36 = vector.broadcast %cst_19 : f32 to vector<1x64xf32>
    %37 = arith.addf %35, %36 : vector<1x64xf32>
    %cst_20 = arith.constant 5.000000e-01 : f32
    %38 = vector.broadcast %cst_20 : f32 to vector<1x64xf32>
    %39 = arith.mulf %38, %37 : vector<1x64xf32>
    %40 = arith.mulf %29, %8 : vector<1x64xf32>
    %41 = arith.mulf %21, %31 : vector<1x64xf32>
    %42 = arith.addf %40, %41 : vector<1x64xf32>
    %43 = math.tanh %42 : vector<1x64xf32>
    %44 = arith.mulf %39, %43 : vector<1x64xf32>
    %45 = arith.index_cast %c0_i32 : i32 to index
    %c0_21 = arith.constant 0 : index
    %46 = vector.load %arg4[%45, %c0_21] : memref<8x64xf32, #tpu.memory_space<vmem>>, vector<1x64xf32>
    tpu.vector_store %arg4[%45, %c0_21], %44 {strides = array<i32>} : memref<8x64xf32, #tpu.memory_space<vmem>>, vector<1x64xf32>,
    %c1_i32 = arith.constant 1 : i32
    %47 = arith.index_cast %c1_i32 : i32 to index
    %c0_22 = arith.constant 0 : index
    %48 = vector.load %arg7[%47, %c0_22] : memref<8x256xf32, #tpu.memory_space<vmem>>, vector<1x256xf32>
    %49 = arith.truncf %44 : vector<1x64xf32> to vector<1x64xbf16>
    %cst_23 = arith.constant dense<0.000000e+00> : vector<1x256xf32>
    %50 = tpu.matmul %49, %7, %cst_23 {dimension_numbers = #tpu.dot_dimension_numbers<[1], [0], [0], [1], [0, 0, 1, 1], [], []>} : vector<1x64xbf16>, vector<64x256xbf16>, vector<1x256xf32> -> vector<1x256xf32>
    %51 = arith.addf %48, %50 : vector<1x256xf32>
    %52 = vector.extract_strided_slice %51 {offsets = [0, 0], sizes = [1, 64], strides = [1, 1]} : vector<1x256xf32> to vector<1x64xf32>
    %cst_24 = arith.constant 5.000000e-01 : f32
    %53 = vector.broadcast %cst_24 : f32 to vector<1x64xf32>
    %54 = arith.mulf %53, %52 : vector<1x64xf32>
    %55 = math.tanh %54 : vector<1x64xf32>
    %cst_25 = arith.constant 1.000000e+00 : f32
    %56 = vector.broadcast %cst_25 : f32 to vector<1x64xf32>
    %57 = arith.addf %55, %56 : vector<1x64xf32>
    %cst_26 = arith.constant 5.000000e-01 : f32
    %58 = vector.broadcast %cst_26 : f32 to vector<1x64xf32>
    %59 = arith.mulf %58, %57 : vector<1x64xf32>
    %60 = vector.extract_strided_slice %51 {offsets = [0, 64], sizes = [1, 64], strides = [1, 1]} : vector<1x256xf32> to vector<1x64xf32>
    %cst_27 = arith.constant 5.000000e-01 : f32
    %61 = vector.broadcast %cst_27 : f32 to vector<1x64xf32>
    %62 = arith.mulf %61, %60 : vector<1x64xf32>
    %63 = math.tanh %62 : vector<1x64xf32>
    %cst_28 = arith.constant 1.000000e+00 : f32
    %64 = vector.broadcast %cst_28 : f32 to vector<1x64xf32>
    %65 = arith.addf %63, %64 : vector<1x64xf32>
    %cst_29 = arith.constant 5.000000e-01 : f32
    %66 = vector.broadcast %cst_29 : f32 to vector<1x64xf32>
    %67 = arith.mulf %66, %65 : vector<1x64xf32>
    %68 = vector.extract_strided_slice %51 {offsets = [0, 128], sizes = [1, 64], strides = [1, 1]} : vector<1x256xf32> to vector<1x64xf32>
    %69 = math.tanh %68 : vector<1x64xf32>
    %70 = vector.extract_strided_slice %51 {offsets = [0, 192], sizes = [1, 64], strides = [1, 1]} : vector<1x256xf32> to vector<1x64xf32>
    %cst_30 = arith.constant 5.000000e-01 : f32
    %71 = vector.broadcast %cst_30 : f32 to vector<1x64xf32>
    %72 = arith.mulf %71, %70 : vector<1x64xf32>
    %73 = math.tanh %72 : vector<1x64xf32>
    %cst_31 = arith.constant 1.000000e+00 : f32
    %74 = vector.broadcast %cst_31 : f32 to vector<1x64xf32>
    %75 = arith.addf %73, %74 : vector<1x64xf32>
    %cst_32 = arith.constant 5.000000e-01 : f32
    %76 = vector.broadcast %cst_32 : f32 to vector<1x64xf32>
    %77 = arith.mulf %76, %75 : vector<1x64xf32>
    %78 = arith.mulf %67, %42 : vector<1x64xf32>
    %79 = arith.mulf %59, %69 : vector<1x64xf32>
    %80 = arith.addf %78, %79 : vector<1x64xf32>
    %81 = math.tanh %80 : vector<1x64xf32>
    %82 = arith.mulf %77, %81 : vector<1x64xf32>
    %83 = arith.index_cast %c1_i32 : i32 to index
    %c0_33 = arith.constant 0 : index
    %84 = vector.load %arg4[%83, %c0_33] : memref<8x64xf32, #tpu.memory_space<vmem>>, vector<1x64xf32>
    tpu.vector_store %arg4[%83, %c0_33], %82 {strides = array<i32>} : memref<8x64xf32, #tpu.memory_space<vmem>>, vector<1x64xf32>,
    %c2_i32 = arith.constant 2 : i32
    %85 = arith.index_cast %c2_i32 : i32 to index
    %c0_34 = arith.constant 0 : index
    %86 = vector.load %arg7[%85, %c0_34] : memref<8x256xf32, #tpu.memory_space<vmem>>, vector<1x256xf32>
    %87 = arith.truncf %82 : vector<1x64xf32> to vector<1x64xbf16>
    %cst_35 = arith.constant dense<0.000000e+00> : vector<1x256xf32>
    %88 = tpu.matmul %87, %7, %cst_35 {dimension_numbers = #tpu.dot_dimension_numbers<[1], [0], [0], [1], [0, 0, 1, 1], [], []>} : vector<1x64xbf16>, vector<64x256xbf16>, vector<1x256xf32> -> vector<1x256xf32>
    %89 = arith.addf %86, %88 : vector<1x256xf32>
    %90 = vector.extract_strided_slice %89 {offsets = [0, 0], sizes = [1, 64], strides = [1, 1]} : vector<1x256xf32> to vector<1x64xf32>
    %cst_36 = arith.constant 5.000000e-01 : f32
    %91 = vector.broadcast %cst_36 : f32 to vector<1x64xf32>
    %92 = arith.mulf %91, %90 : vector<1x64xf32>
    %93 = math.tanh %92 : vector<1x64xf32>
    %cst_37 = arith.constant 1.000000e+00 : f32
    %94 = vector.broadcast %cst_37 : f32 to vector<1x64xf32>
    %95 = arith.addf %93, %94 : vector<1x64xf32>
    %cst_38 = arith.constant 5.000000e-01 : f32
    %96 = vector.broadcast %cst_38 : f32 to vector<1x64xf32>
    %97 = arith.mulf %96, %95 : vector<1x64xf32>
    %98 = vector.extract_strided_slice %89 {offsets = [0, 64], sizes = [1, 64], strides = [1, 1]} : vector<1x256xf32> to vector<1x64xf32>
    %cst_39 = arith.constant 5.000000e-01 : f32
    %99 = vector.broadcast %cst_39 : f32 to vector<1x64xf32>
    %100 = arith.mulf %99, %98 : vector<1x64xf32>
    %101 = math.tanh %100 : vector<1x64xf32>
    %cst_40 = arith.constant 1.000000e+00 : f32
    %102 = vector.broadcast %cst_40 : f32 to vector<1x64xf32>
    %103 = arith.addf %101, %102 : vector<1x64xf32>
    %cst_41 = arith.constant 5.000000e-01 : f32
    %104 = vector.broadcast %cst_41 : f32 to vector<1x64xf32>
    %105 = arith.mulf %104, %103 : vector<1x64xf32>
    %106 = vector.extract_strided_slice %89 {offsets = [0, 128], sizes = [1, 64], strides = [1, 1]} : vector<1x256xf32> to vector<1x64xf32>
    %107 = math.tanh %106 : vector<1x64xf32>
    %108 = vector.extract_strided_slice %89 {offsets = [0, 192], sizes = [1, 64], strides = [1, 1]} : vector<1x256xf32> to vector<1x64xf32>
    %cst_42 = arith.constant 5.000000e-01 : f32
    %109 = vector.broadcast %cst_42 : f32 to vector<1x64xf32>
    %110 = arith.mulf %109, %108 : vector<1x64xf32>
    %111 = math.tanh %110 : vector<1x64xf32>
    %cst_43 = arith.constant 1.000000e+00 : f32
    %112 = vector.broadcast %cst_43 : f32 to vector<1x64xf32>
    %113 = arith.addf %111, %112 : vector<1x64xf32>
    %cst_44 = arith.constant 5.000000e-01 : f32
    %114 = vector.broadcast %cst_44 : f32 to vector<1x64xf32>
    %115 = arith.mulf %114, %113 : vector<1x64xf32>
    %116 = arith.mulf %105, %80 : vector<1x64xf32>
    %117 = arith.mulf %97, %107 : vector<1x64xf32>
    %118 = arith.addf %116, %117 : vector<1x64xf32>
    %119 = math.tanh %118 : vector<1x64xf32>
    %120 = arith.mulf %115, %119 : vector<1x64xf32>
    %121 = arith.index_cast %c2_i32 : i32 to index
    %c0_45 = arith.constant 0 : index
    %122 = vector.load %arg4[%121, %c0_45] : memref<8x64xf32, #tpu.memory_space<vmem>>, vector<1x64xf32>
    tpu.vector_store %arg4[%121, %c0_45], %120 {strides = array<i32>} : memref<8x64xf32, #tpu.memory_space<vmem>>, vector<1x64xf32>,
    %c3_i32 = arith.constant 3 : i32
    %123 = arith.index_cast %c3_i32 : i32 to index
    %c0_46 = arith.constant 0 : index
    %124 = vector.load %arg7[%123, %c0_46] : memref<8x256xf32, #tpu.memory_space<vmem>>, vector<1x256xf32>
    %125 = arith.truncf %120 : vector<1x64xf32> to vector<1x64xbf16>
    %cst_47 = arith.constant dense<0.000000e+00> : vector<1x256xf32>
    %126 = tpu.matmul %125, %7, %cst_47 {dimension_numbers = #tpu.dot_dimension_numbers<[1], [0], [0], [1], [0, 0, 1, 1], [], []>} : vector<1x64xbf16>, vector<64x256xbf16>, vector<1x256xf32> -> vector<1x256xf32>
    %127 = arith.addf %124, %126 : vector<1x256xf32>
    %128 = vector.extract_strided_slice %127 {offsets = [0, 0], sizes = [1, 64], strides = [1, 1]} : vector<1x256xf32> to vector<1x64xf32>
    %cst_48 = arith.constant 5.000000e-01 : f32
    %129 = vector.broadcast %cst_48 : f32 to vector<1x64xf32>
    %130 = arith.mulf %129, %128 : vector<1x64xf32>
    %131 = math.tanh %130 : vector<1x64xf32>
    %cst_49 = arith.constant 1.000000e+00 : f32
    %132 = vector.broadcast %cst_49 : f32 to vector<1x64xf32>
    %133 = arith.addf %131, %132 : vector<1x64xf32>
    %cst_50 = arith.constant 5.000000e-01 : f32
    %134 = vector.broadcast %cst_50 : f32 to vector<1x64xf32>
    %135 = arith.mulf %134, %133 : vector<1x64xf32>
    %136 = vector.extract_strided_slice %127 {offsets = [0, 64], sizes = [1, 64], strides = [1, 1]} : vector<1x256xf32> to vector<1x64xf32>
    %cst_51 = arith.constant 5.000000e-01 : f32
    %137 = vector.broadcast %cst_51 : f32 to vector<1x64xf32>
    %138 = arith.mulf %137, %136 : vector<1x64xf32>
    %139 = math.tanh %138 : vector<1x64xf32>
    %cst_52 = arith.constant 1.000000e+00 : f32
    %140 = vector.broadcast %cst_52 : f32 to vector<1x64xf32>
    %141 = arith.addf %139, %140 : vector<1x64xf32>
    %cst_53 = arith.constant 5.000000e-01 : f32
    %142 = vector.broadcast %cst_53 : f32 to vector<1x64xf32>
    %143 = arith.mulf %142, %141 : vector<1x64xf32>
    %144 = vector.extract_strided_slice %127 {offsets = [0, 128], sizes = [1, 64], strides = [1, 1]} : vector<1x256xf32> to vector<1x64xf32>
    %145 = math.tanh %144 : vector<1x64xf32>
    %146 = vector.extract_strided_slice %127 {offsets = [0, 192], sizes = [1, 64], strides = [1, 1]} : vector<1x256xf32> to vector<1x64xf32>
    %cst_54 = arith.constant 5.000000e-01 : f32
    %147 = vector.broadcast %cst_54 : f32 to vector<1x64xf32>
    %148 = arith.mulf %147, %146 : vector<1x64xf32>
    %149 = math.tanh %148 : vector<1x64xf32>
    %cst_55 = arith.constant 1.000000e+00 : f32
    %150 = vector.broadcast %cst_55 : f32 to vector<1x64xf32>
    %151 = arith.addf %149, %150 : vector<1x64xf32>
    %cst_56 = arith.constant 5.000000e-01 : f32
    %152 = vector.broadcast %cst_56 : f32 to vector<1x64xf32>
    %153 = arith.mulf %152, %151 : vector<1x64xf32>
    %154 = arith.mulf %143, %118 : vector<1x64xf32>
    %155 = arith.mulf %135, %145 : vector<1x64xf32>
    %156 = arith.addf %154, %155 : vector<1x64xf32>
    %157 = math.tanh %156 : vector<1x64xf32>
    %158 = arith.mulf %153, %157 : vector<1x64xf32>
    %159 = arith.index_cast %c3_i32 : i32 to index
    %c0_57 = arith.constant 0 : index
    %160 = vector.load %arg4[%159, %c0_57] : memref<8x64xf32, #tpu.memory_space<vmem>>, vector<1x64xf32>
    tpu.vector_store %arg4[%159, %c0_57], %158 {strides = array<i32>} : memref<8x64xf32, #tpu.memory_space<vmem>>, vector<1x64xf32>,
    %c4_i32 = arith.constant 4 : i32
    %161 = arith.index_cast %c4_i32 : i32 to index
    %c0_58 = arith.constant 0 : index
    %162 = vector.load %arg7[%161, %c0_58] : memref<8x256xf32, #tpu.memory_space<vmem>>, vector<1x256xf32>
    %163 = arith.truncf %158 : vector<1x64xf32> to vector<1x64xbf16>
    %cst_59 = arith.constant dense<0.000000e+00> : vector<1x256xf32>
    %164 = tpu.matmul %163, %7, %cst_59 {dimension_numbers = #tpu.dot_dimension_numbers<[1], [0], [0], [1], [0, 0, 1, 1], [], []>} : vector<1x64xbf16>, vector<64x256xbf16>, vector<1x256xf32> -> vector<1x256xf32>
    %165 = arith.addf %162, %164 : vector<1x256xf32>
    %166 = vector.extract_strided_slice %165 {offsets = [0, 0], sizes = [1, 64], strides = [1, 1]} : vector<1x256xf32> to vector<1x64xf32>
    %cst_60 = arith.constant 5.000000e-01 : f32
    %167 = vector.broadcast %cst_60 : f32 to vector<1x64xf32>
    %168 = arith.mulf %167, %166 : vector<1x64xf32>
    %169 = math.tanh %168 : vector<1x64xf32>
    %cst_61 = arith.constant 1.000000e+00 : f32
    %170 = vector.broadcast %cst_61 : f32 to vector<1x64xf32>
    %171 = arith.addf %169, %170 : vector<1x64xf32>
    %cst_62 = arith.constant 5.000000e-01 : f32
    %172 = vector.broadcast %cst_62 : f32 to vector<1x64xf32>
    %173 = arith.mulf %172, %171 : vector<1x64xf32>
    %174 = vector.extract_strided_slice %165 {offsets = [0, 64], sizes = [1, 64], strides = [1, 1]} : vector<1x256xf32> to vector<1x64xf32>
    %cst_63 = arith.constant 5.000000e-01 : f32
    %175 = vector.broadcast %cst_63 : f32 to vector<1x64xf32>
    %176 = arith.mulf %175, %174 : vector<1x64xf32>
    %177 = math.tanh %176 : vector<1x64xf32>
    %cst_64 = arith.constant 1.000000e+00 : f32
    %178 = vector.broadcast %cst_64 : f32 to vector<1x64xf32>
    %179 = arith.addf %177, %178 : vector<1x64xf32>
    %cst_65 = arith.constant 5.000000e-01 : f32
    %180 = vector.broadcast %cst_65 : f32 to vector<1x64xf32>
    %181 = arith.mulf %180, %179 : vector<1x64xf32>
    %182 = vector.extract_strided_slice %165 {offsets = [0, 128], sizes = [1, 64], strides = [1, 1]} : vector<1x256xf32> to vector<1x64xf32>
    %183 = math.tanh %182 : vector<1x64xf32>
    %184 = vector.extract_strided_slice %165 {offsets = [0, 192], sizes = [1, 64], strides = [1, 1]} : vector<1x256xf32> to vector<1x64xf32>
    %cst_66 = arith.constant 5.000000e-01 : f32
    %185 = vector.broadcast %cst_66 : f32 to vector<1x64xf32>
    %186 = arith.mulf %185, %184 : vector<1x64xf32>
    %187 = math.tanh %186 : vector<1x64xf32>
    %cst_67 = arith.constant 1.000000e+00 : f32
    %188 = vector.broadcast %cst_67 : f32 to vector<1x64xf32>
    %189 = arith.addf %187, %188 : vector<1x64xf32>
    %cst_68 = arith.constant 5.000000e-01 : f32
    %190 = vector.broadcast %cst_68 : f32 to vector<1x64xf32>
    %191 = arith.mulf %190, %189 : vector<1x64xf32>
    %192 = arith.mulf %181, %156 : vector<1x64xf32>
    %193 = arith.mulf %173, %183 : vector<1x64xf32>
    %194 = arith.addf %192, %193 : vector<1x64xf32>
    %195 = math.tanh %194 : vector<1x64xf32>
    %196 = arith.mulf %191, %195 : vector<1x64xf32>
    %197 = arith.index_cast %c4_i32 : i32 to index
    %c0_69 = arith.constant 0 : index
    %198 = vector.load %arg4[%197, %c0_69] : memref<8x64xf32, #tpu.memory_space<vmem>>, vector<1x64xf32>
    tpu.vector_store %arg4[%197, %c0_69], %196 {strides = array<i32>} : memref<8x64xf32, #tpu.memory_space<vmem>>, vector<1x64xf32>,
    %c5_i32 = arith.constant 5 : i32
    %199 = arith.index_cast %c5_i32 : i32 to index
    %c0_70 = arith.constant 0 : index
    %200 = vector.load %arg7[%199, %c0_70] : memref<8x256xf32, #tpu.memory_space<vmem>>, vector<1x256xf32>
    %201 = arith.truncf %196 : vector<1x64xf32> to vector<1x64xbf16>
    %cst_71 = arith.constant dense<0.000000e+00> : vector<1x256xf32>
    %202 = tpu.matmul %201, %7, %cst_71 {dimension_numbers = #tpu.dot_dimension_numbers<[1], [0], [0], [1], [0, 0, 1, 1], [], []>} : vector<1x64xbf16>, vector<64x256xbf16>, vector<1x256xf32> -> vector<1x256xf32>
    %203 = arith.addf %200, %202 : vector<1x256xf32>
    %204 = vector.extract_strided_slice %203 {offsets = [0, 0], sizes = [1, 64], strides = [1, 1]} : vector<1x256xf32> to vector<1x64xf32>
    %cst_72 = arith.constant 5.000000e-01 : f32
    %205 = vector.broadcast %cst_72 : f32 to vector<1x64xf32>
    %206 = arith.mulf %205, %204 : vector<1x64xf32>
    %207 = math.tanh %206 : vector<1x64xf32>
    %cst_73 = arith.constant 1.000000e+00 : f32
    %208 = vector.broadcast %cst_73 : f32 to vector<1x64xf32>
    %209 = arith.addf %207, %208 : vector<1x64xf32>
    %cst_74 = arith.constant 5.000000e-01 : f32
    %210 = vector.broadcast %cst_74 : f32 to vector<1x64xf32>
    %211 = arith.mulf %210, %209 : vector<1x64xf32>
    %212 = vector.extract_strided_slice %203 {offsets = [0, 64], sizes = [1, 64], strides = [1, 1]} : vector<1x256xf32> to vector<1x64xf32>
    %cst_75 = arith.constant 5.000000e-01 : f32
    %213 = vector.broadcast %cst_75 : f32 to vector<1x64xf32>
    %214 = arith.mulf %213, %212 : vector<1x64xf32>
    %215 = math.tanh %214 : vector<1x64xf32>
    %cst_76 = arith.constant 1.000000e+00 : f32
    %216 = vector.broadcast %cst_76 : f32 to vector<1x64xf32>
    %217 = arith.addf %215, %216 : vector<1x64xf32>
    %cst_77 = arith.constant 5.000000e-01 : f32
    %218 = vector.broadcast %cst_77 : f32 to vector<1x64xf32>
    %219 = arith.mulf %218, %217 : vector<1x64xf32>
    %220 = vector.extract_strided_slice %203 {offsets = [0, 128], sizes = [1, 64], strides = [1, 1]} : vector<1x256xf32> to vector<1x64xf32>
    %221 = math.tanh %220 : vector<1x64xf32>
    %222 = vector.extract_strided_slice %203 {offsets = [0, 192], sizes = [1, 64], strides = [1, 1]} : vector<1x256xf32> to vector<1x64xf32>
    %cst_78 = arith.constant 5.000000e-01 : f32
    %223 = vector.broadcast %cst_78 : f32 to vector<1x64xf32>
    %224 = arith.mulf %223, %222 : vector<1x64xf32>
    %225 = math.tanh %224 : vector<1x64xf32>
    %cst_79 = arith.constant 1.000000e+00 : f32
    %226 = vector.broadcast %cst_79 : f32 to vector<1x64xf32>
    %227 = arith.addf %225, %226 : vector<1x64xf32>
    %cst_80 = arith.constant 5.000000e-01 : f32
    %228 = vector.broadcast %cst_80 : f32 to vector<1x64xf32>
    %229 = arith.mulf %228, %227 : vector<1x64xf32>
    %230 = arith.mulf %219, %194 : vector<1x64xf32>
    %231 = arith.mulf %211, %221 : vector<1x64xf32>
    %232 = arith.addf %230, %231 : vector<1x64xf32>
    %233 = math.tanh %232 : vector<1x64xf32>
    %234 = arith.mulf %229, %233 : vector<1x64xf32>
    %235 = arith.index_cast %c5_i32 : i32 to index
    %c0_81 = arith.constant 0 : index
    %236 = vector.load %arg4[%235, %c0_81] : memref<8x64xf32, #tpu.memory_space<vmem>>, vector<1x64xf32>
    tpu.vector_store %arg4[%235, %c0_81], %234 {strides = array<i32>} : memref<8x64xf32, #tpu.memory_space<vmem>>, vector<1x64xf32>,
    %c6_i32 = arith.constant 6 : i32
    %237 = arith.index_cast %c6_i32 : i32 to index
    %c0_82 = arith.constant 0 : index
    %238 = vector.load %arg7[%237, %c0_82] : memref<8x256xf32, #tpu.memory_space<vmem>>, vector<1x256xf32>
    %239 = arith.truncf %234 : vector<1x64xf32> to vector<1x64xbf16>
    %cst_83 = arith.constant dense<0.000000e+00> : vector<1x256xf32>
    %240 = tpu.matmul %239, %7, %cst_83 {dimension_numbers = #tpu.dot_dimension_numbers<[1], [0], [0], [1], [0, 0, 1, 1], [], []>} : vector<1x64xbf16>, vector<64x256xbf16>, vector<1x256xf32> -> vector<1x256xf32>
    %241 = arith.addf %238, %240 : vector<1x256xf32>
    %242 = vector.extract_strided_slice %241 {offsets = [0, 0], sizes = [1, 64], strides = [1, 1]} : vector<1x256xf32> to vector<1x64xf32>
    %cst_84 = arith.constant 5.000000e-01 : f32
    %243 = vector.broadcast %cst_84 : f32 to vector<1x64xf32>
    %244 = arith.mulf %243, %242 : vector<1x64xf32>
    %245 = math.tanh %244 : vector<1x64xf32>
    %cst_85 = arith.constant 1.000000e+00 : f32
    %246 = vector.broadcast %cst_85 : f32 to vector<1x64xf32>
    %247 = arith.addf %245, %246 : vector<1x64xf32>
    %cst_86 = arith.constant 5.000000e-01 : f32
    %248 = vector.broadcast %cst_86 : f32 to vector<1x64xf32>
    %249 = arith.mulf %248, %247 : vector<1x64xf32>
    %250 = vector.extract_strided_slice %241 {offsets = [0, 64], sizes = [1, 64], strides = [1, 1]} : vector<1x256xf32> to vector<1x64xf32>
    %cst_87 = arith.constant 5.000000e-01 : f32
    %251 = vector.broadcast %cst_87 : f32 to vector<1x64xf32>
    %252 = arith.mulf %251, %250 : vector<1x64xf32>
    %253 = math.tanh %252 : vector<1x64xf32>
    %cst_88 = arith.constant 1.000000e+00 : f32
    %254 = vector.broadcast %cst_88 : f32 to vector<1x64xf32>
    %255 = arith.addf %253, %254 : vector<1x64xf32>
    %cst_89 = arith.constant 5.000000e-01 : f32
    %256 = vector.broadcast %cst_89 : f32 to vector<1x64xf32>
    %257 = arith.mulf %256, %255 : vector<1x64xf32>
    %258 = vector.extract_strided_slice %241 {offsets = [0, 128], sizes = [1, 64], strides = [1, 1]} : vector<1x256xf32> to vector<1x64xf32>
    %259 = math.tanh %258 : vector<1x64xf32>
    %260 = vector.extract_strided_slice %241 {offsets = [0, 192], sizes = [1, 64], strides = [1, 1]} : vector<1x256xf32> to vector<1x64xf32>
    %cst_90 = arith.constant 5.000000e-01 : f32
    %261 = vector.broadcast %cst_90 : f32 to vector<1x64xf32>
    %262 = arith.mulf %261, %260 : vector<1x64xf32>
    %263 = math.tanh %262 : vector<1x64xf32>
    %cst_91 = arith.constant 1.000000e+00 : f32
    %264 = vector.broadcast %cst_91 : f32 to vector<1x64xf32>
    %265 = arith.addf %263, %264 : vector<1x64xf32>
    %cst_92 = arith.constant 5.000000e-01 : f32
    %266 = vector.broadcast %cst_92 : f32 to vector<1x64xf32>
    %267 = arith.mulf %266, %265 : vector<1x64xf32>
    %268 = arith.mulf %257, %232 : vector<1x64xf32>
    %269 = arith.mulf %249, %259 : vector<1x64xf32>
    %270 = arith.addf %268, %269 : vector<1x64xf32>
    %271 = math.tanh %270 : vector<1x64xf32>
    %272 = arith.mulf %267, %271 : vector<1x64xf32>
    %273 = arith.index_cast %c6_i32 : i32 to index
    %c0_93 = arith.constant 0 : index
    %274 = vector.load %arg4[%273, %c0_93] : memref<8x64xf32, #tpu.memory_space<vmem>>, vector<1x64xf32>
    tpu.vector_store %arg4[%273, %c0_93], %272 {strides = array<i32>} : memref<8x64xf32, #tpu.memory_space<vmem>>, vector<1x64xf32>,
    %c7_i32 = arith.constant 7 : i32
    %275 = arith.index_cast %c7_i32 : i32 to index
    %c0_94 = arith.constant 0 : index
    %276 = vector.load %arg7[%275, %c0_94] : memref<8x256xf32, #tpu.memory_space<vmem>>, vector<1x256xf32>
    %277 = arith.truncf %272 : vector<1x64xf32> to vector<1x64xbf16>
    %cst_95 = arith.constant dense<0.000000e+00> : vector<1x256xf32>
    %278 = tpu.matmul %277, %7, %cst_95 {dimension_numbers = #tpu.dot_dimension_numbers<[1], [0], [0], [1], [0, 0, 1, 1], [], []>} : vector<1x64xbf16>, vector<64x256xbf16>, vector<1x256xf32> -> vector<1x256xf32>
    %279 = arith.addf %276, %278 : vector<1x256xf32>
    %280 = vector.extract_strided_slice %279 {offsets = [0, 0], sizes = [1, 64], strides = [1, 1]} : vector<1x256xf32> to vector<1x64xf32>
    %cst_96 = arith.constant 5.000000e-01 : f32
    %281 = vector.broadcast %cst_96 : f32 to vector<1x64xf32>
    %282 = arith.mulf %281, %280 : vector<1x64xf32>
    %283 = math.tanh %282 : vector<1x64xf32>
    %cst_97 = arith.constant 1.000000e+00 : f32
    %284 = vector.broadcast %cst_97 : f32 to vector<1x64xf32>
    %285 = arith.addf %283, %284 : vector<1x64xf32>
    %cst_98 = arith.constant 5.000000e-01 : f32
    %286 = vector.broadcast %cst_98 : f32 to vector<1x64xf32>
    %287 = arith.mulf %286, %285 : vector<1x64xf32>
    %288 = vector.extract_strided_slice %279 {offsets = [0, 64], sizes = [1, 64], strides = [1, 1]} : vector<1x256xf32> to vector<1x64xf32>
    %cst_99 = arith.constant 5.000000e-01 : f32
    %289 = vector.broadcast %cst_99 : f32 to vector<1x64xf32>
    %290 = arith.mulf %289, %288 : vector<1x64xf32>
    %291 = math.tanh %290 : vector<1x64xf32>
    %cst_100 = arith.constant 1.000000e+00 : f32
    %292 = vector.broadcast %cst_100 : f32 to vector<1x64xf32>
    %293 = arith.addf %291, %292 : vector<1x64xf32>
    %cst_101 = arith.constant 5.000000e-01 : f32
    %294 = vector.broadcast %cst_101 : f32 to vector<1x64xf32>
    %295 = arith.mulf %294, %293 : vector<1x64xf32>
    %296 = vector.extract_strided_slice %279 {offsets = [0, 128], sizes = [1, 64], strides = [1, 1]} : vector<1x256xf32> to vector<1x64xf32>
    %297 = math.tanh %296 : vector<1x64xf32>
    %298 = vector.extract_strided_slice %279 {offsets = [0, 192], sizes = [1, 64], strides = [1, 1]} : vector<1x256xf32> to vector<1x64xf32>
    %cst_102 = arith.constant 5.000000e-01 : f32
    %299 = vector.broadcast %cst_102 : f32 to vector<1x64xf32>
    %300 = arith.mulf %299, %298 : vector<1x64xf32>
    %301 = math.tanh %300 : vector<1x64xf32>
    %cst_103 = arith.constant 1.000000e+00 : f32
    %302 = vector.broadcast %cst_103 : f32 to vector<1x64xf32>
    %303 = arith.addf %301, %302 : vector<1x64xf32>
    %cst_104 = arith.constant 5.000000e-01 : f32
    %304 = vector.broadcast %cst_104 : f32 to vector<1x64xf32>
    %305 = arith.mulf %304, %303 : vector<1x64xf32>
    %306 = arith.mulf %295, %270 : vector<1x64xf32>
    %307 = arith.mulf %287, %297 : vector<1x64xf32>
    %308 = arith.addf %306, %307 : vector<1x64xf32>
    %309 = math.tanh %308 : vector<1x64xf32>
    %310 = arith.mulf %305, %309 : vector<1x64xf32>
    %311 = arith.index_cast %c7_i32 : i32 to index
    %c0_105 = arith.constant 0 : index
    %312 = vector.load %arg4[%311, %c0_105] : memref<8x64xf32, #tpu.memory_space<vmem>>, vector<1x64xf32>
    tpu.vector_store %arg4[%311, %c0_105], %310 {strides = array<i32>} : memref<8x64xf32, #tpu.memory_space<vmem>>, vector<1x64xf32>,
    %c8_i32 = arith.constant 8 : i32
    %c0_106 = arith.constant 0 : index
    %c0_107 = arith.constant 0 : index
    %313 = vector.load %arg5[%c0_106, %c0_107] : memref<1x64xf32, #tpu.memory_space<vmem>>, vector<1x64xf32>
    tpu.vector_store %arg5[%c0_106, %c0_107], %310 {strides = array<i32>} : memref<1x64xf32, #tpu.memory_space<vmem>>, vector<1x64xf32>,
    %c0_108 = arith.constant 0 : index
    %c0_109 = arith.constant 0 : index
    %314 = vector.load %arg6[%c0_108, %c0_109] : memref<1x64xf32, #tpu.memory_space<vmem>>, vector<1x64xf32>
    tpu.vector_store %arg6[%c0_108, %c0_109], %308 {strides = array<i32>} : memref<1x64xf32, #tpu.memory_space<vmem>>, vector<1x64xf32>,
    return
  }
}

</mosaic_0001>

<llo_original>
// kernel: tpu_custom_call.1
$region0: #{tpu_custom_call.1}
  #allocation0 [shape = 'u32[]', space=smem, size = 0x4, offset = 0x4, fixed_abs, tag = 'smem constant byte address 0x4 - core index']
  #allocation1 [shape = 'u32[144,128]{1,0:T(1,128)}', space=vmem, size = 0x12000, scoped, tag = 'internal scratch']
  #allocation2 [shape = 'f32[8,256]{1,0:T(8,128)}', space=vmem, size = 0x2000, scoped, tag = 'scratch operand']
  %s0 = inlined_call_operand.hbm [shape: bf16[8,64], index: 0, kind: input, shape index: {}]
  %s1 = inlined_call_operand.hbm [shape: bf16[64,256], index: 1, kind: input, shape index: {}]
  %s2 = inlined_call_operand.hbm [shape: bf16[64,256], index: 2, kind: input, shape index: {}]
  %s3 = inlined_call_operand.vmem [shape: f32[1,256], index: 3, kind: input, shape index: {}]
  %s4 = inlined_call_operand.hbm [shape: f32[8,64], index: 4, kind: output, shape index: {0}]
  %s5 = inlined_call_operand.hbm [shape: f32[1,64], index: 5, kind: output, shape index: {1}]
  %s6 = inlined_call_operand.hbm [shape: f32[1,64], index: 6, kind: output, shape index: {2}]
  %7 = xla_tuple %s4, %s5, %s6
  %s8 = sld [smem:[#allocation0]]
  $region54: #{tpu_custom_call.1} parent=0
    _
  %s10 = ssub.s32 1, %s8
  %s11 = scalar_select 0, %s10, %s8
  $region1: #{tpu_custom_call.1} parent=0
    #allocation3 [shape = 'u8[2048]{0}', space=vmem, size = 0x800, scoped, tag = 'input window, operand 0, single buffered']
    #allocation4 [shape = 's32[1]{0}', space=sflag, size = 0x4, scoped, tag = 'scoped memory for tpu_custom_call.1']
    #allocation5 [shape = 's32[1]{0}', space=sflag, size = 0x4, scoped, tag = 'scoped memory for tpu_custom_call.1']
    #allocation6 [shape = 'u8[32768]{0}', space=vmem, size = 0x8000, scoped, tag = 'input window, operand 1, single buffered']
    #allocation7 [shape = 's32[1]{0}', space=sflag, size = 0x4, scoped, tag = 'scoped memory for tpu_custom_call.1']
    #allocation8 [shape = 'u8[32768]{0}', space=vmem, size = 0x8000, scoped, tag = 'input window, operand 2, single buffered']
    #allocation9 [shape = 'u8[4096]{0}', space=vmem, size = 0x1000, scoped, tag = 'output window, operand 0, single buffered']
    #allocation10 [shape = 'u8[512]{0}', space=vmem, size = 0x400, scoped, tag = 'output window, operand 1, single buffered']
    #allocation11 [shape = 's32[1]{0}', space=sflag, size = 0x4, scoped, tag = 'scoped memory for tpu_custom_call.1']
    #allocation12 [shape = 'u8[512]{0}', space=vmem, size = 0x400, scoped, tag = 'output window, operand 2, single buffered']
    %12 = vsyncpa [#allocation4], 0
    %13 = vsyncpa [#allocation7], 0
    %14 = vsyncpa [#allocation5], 0
    %15 = vsyncpa [#allocation11], 0
    // Predicated region
    $region2: #{tpu_custom_call.1} parent=1 // pred_check
      _
    $region3: #{tpu_custom_call.1} parent=1 // pred_check_branch
      %17 = sbr.rel (0) target = $region5
    $region4: #{tpu_custom_call.1} parent=1 // pred_region
      %s19 = ssub.s32 64, 64
      %20 = vsyncadd [#allocation4], %s19
      %s22 = sshll.u32 [#allocation3], 4
      %s23 = int_to_ptr.vmem [resolvable:$true] %s22
      %25 = dma.hbm_to_vmem [thread:$0]  %s0, 64, %s23, [#allocation4]
    $region5: #{tpu_custom_call.1} parent=1 // pred_fallthru
      _
    // Predicated region
    $region6: #{tpu_custom_call.1} parent=1 // pred_check
      _
    $region7: #{tpu_custom_call.1} parent=1 // pred_check_branch
      %27 = sbr.rel (0) target = $region9
    $region8: #{tpu_custom_call.1} parent=1 // pred_region
      %s29 = ssub.s32 1024, 1024
      %30 = vsyncadd [#allocation7], %s29
      %s31 = sshll.u32 [#allocation6], 4
      %s32 = int_to_ptr.vmem [resolvable:$true] %s31
      %37 = dma.hbm_to_vmem [thread:$0]  %s1, 1024, %s32, [#allocation7], 128, 128, 8
    $region9: #{tpu_custom_call.1} parent=1 // pred_fallthru
      _
    // Predicated region
    $region10: #{tpu_custom_call.1} parent=1 // pred_check
      _
    $region11: #{tpu_custom_call.1} parent=1 // pred_check_branch
      %39 = sbr.rel (0) target = $region13
    $region12: #{tpu_custom_call.1} parent=1 // pred_region
      %s41 = ssub.s32 1024, 1024
      %42 = vsyncadd [#allocation7], %s41
      %s43 = sshll.u32 [#allocation8], 4
      %s44 = int_to_ptr.vmem [resolvable:$true] %s43
      %49 = dma.hbm_to_vmem [thread:$0]  %s2, 1024, %s44, [#allocation7], 128, 128, 8
    $region13: #{tpu_custom_call.1} parent=1 // pred_fallthru
      _
    // Predicated region
    $region14: #{tpu_custom_call.1} parent=1 // pred_check
      _
    $region15: #{tpu_custom_call.1} parent=1 // pred_check_branch
      %51 = sbr.rel (0) target = $region17
    $region16: #{tpu_custom_call.1} parent=1 // pred_region
      _
    $region17: #{tpu_custom_call.1} parent=1 // pred_fallthru
      _
    // Predicated region
    $region18: #{tpu_custom_call.1} parent=1 // pred_check
      _
    $region19: #{tpu_custom_call.1} parent=1 // pred_check_branch
      %53 = sbr.rel (0) target = $region21
    $region20: #{tpu_custom_call.1} parent=1 // pred_region
      %54 = dma.done [#allocation4], 64
    $region21: #{tpu_custom_call.1} parent=1 // pred_fallthru
      _
    // Predicated region
    $region22: #{tpu_custom_call.1} parent=1 // pred_check
      _
    $region23: #{tpu_custom_call.1} parent=1 // pred_check_branch
      %56 = sbr.rel (0) target = $region25
    $region24: #{tpu_custom_call.1} parent=1 // pred_region
      %57 = dma.done [#allocation7], 1024
    $region25: #{tpu_custom_call.1} parent=1 // pred_fallthru
      _
    // Predicated region
    $region26: #{tpu_custom_call.1} parent=1 // pred_check
      _
    $region27: #{tpu_custom_call.1} parent=1 // pred_check_branch
      %59 = sbr.rel (0) target = $region29
    $region28: #{tpu_custom_call.1} parent=1 // pred_region
      %60 = dma.done [#allocation7], 1024
    $region29: #{tpu_custom_call.1} parent=1 // pred_fallthru
      _
    %v62 = vld [vmem:[#allocation3] sm:$0xf]
    %v63 = vld [vmem:[#allocation6] sm:$0xff]
    %v64 = vld [vmem:[#allocation6 + $0x8] sm:$0xff]
    %v65 = vld [vmem:[#allocation6 + $0x10] sm:$0xff]
    %v66 = vld [vmem:[#allocation6 + $0x18] sm:$0xff]
    %v67 = vld [vmem:[#allocation6 + $0x20] sm:$0xff]
    %v68 = vld [vmem:[#allocation6 + $0x28] sm:$0xff]
    %v69 = vld [vmem:[#allocation6 + $0x30] sm:$0xff]
    %v70 = vld [vmem:[#allocation6 + $0x38] sm:$0xff]
    %v71 = vld [vmem:[%s3] sm:$0x3]
    %v73 = vlaneseq
    %v74 = vshrl.u32 %v73, 7
    %v75 = vsub.s32 0, %v74
    %v76 = vrot.slane %v71, %v75
    %v77 = vlaneseq
    %v78 = vshrl.u32 %v77, 7
    %v79 = vsub.s32 1, %v78
    %v80 = vrot.slane %v71, %v79
    %v91 = vunpack.c.l.b16 %v63
    %v92 = vunpack.c.h.b16 %v63
    %v93 = vunpack.c.l.b16 %v64
    %v94 = vunpack.c.h.b16 %v64
    %v95 = vunpack.c.l.b16 %v65
    %v96 = vunpack.c.h.b16 %v65
    %v97 = vunpack.c.l.b16 %v66
    %v98 = vunpack.c.h.b16 %v66
    %v99 = vunpack.c.l.b16 %v67
    %v100 = vunpack.c.h.b16 %v67
    %v101 = vunpack.c.l.b16 %v68
    %v102 = vunpack.c.h.b16 %v68
    %v103 = vunpack.c.l.b16 %v69
    %v104 = vunpack.c.h.b16 %v69
    %v105 = vunpack.c.l.b16 %v70
    %v106 = vunpack.c.h.b16 %v70
    %v107 = vpack.c.b16 %v93, %v91
    %v108 = vpack.c.b16 %v94, %v92
    %v109 = vpack.c.b16 %v97, %v95
    %v110 = vpack.c.b16 %v98, %v96
    %v111 = vpack.c.b16 %v101, %v99
    %v112 = vpack.c.b16 %v102, %v100
    %v113 = vpack.c.b16 %v105, %v103
    %v114 = vpack.c.b16 %v106, %v104
    %vm123 = vcmask 523264
    %v125 = vsel %vm123, %v62, 0
    %127 = vmatprep.subr.bf16.mxu0 %v108
    %128 = vmatpush1.bf16.msra.mxu0 %v107
    %129 = vmatprep.subr.bf16.mxu0 %v110
    %130 = vmatpush1.bf16.msra.mxu0 %v109
    %131 = vmatprep.subr.bf16.mxu0 %v112
    %132 = vmatpush1.bf16.msra.mxu0 %v111
    %133 = vmatprep.subr.bf16.mxu0 %v114
    %134 = vmatpush1.bf16.msra.mxu0 %v113
    %135 = vmatprep.subr.bf16.mxu0 0
    %136 = vmatpush1.bf16.msra.mxu0 0
    %137 = vmatprep.subr.bf16.mxu0 0
    %138 = vmatpush1.bf16.msra.mxu0 0
    %139 = vmatprep.subr.bf16.mxu0 0
    %140 = vmatpush1.bf16.msra.mxu0 0
    %141 = vmatprep.subr.bf16.mxu0 0
    %142 = vmatpush1.bf16.msra.mxu0 0
    %143 = vmatprep.subr.bf16.mxu0 0
    %144 = vmatpush1.bf16.msra.mxu0 0
    %145 = vmatprep.subr.bf16.mxu0 0
    %146 = vmatpush1.bf16.msra.mxu0 0
    %147 = vmatprep.subr.bf16.mxu0 0
    %148 = vmatpush1.bf16.msra.mxu0 0
    %149 = vmatprep.subr.bf16.mxu0 0
    %150 = vmatpush1.bf16.msra.mxu0 0
    %151 = vmatprep.subr.bf16.mxu0 0
    %152 = vmatpush1.bf16.msra.mxu0 0
    %153 = vmatprep.subr.bf16.mxu0 0
    %154 = vmatpush1.bf16.msra.mxu0 0
    %155 = vmatprep.subr.bf16.mxu0 0
    %156 = vmatpush1.bf16.msra.mxu0 0
    %157 = vmatprep.subr.bf16.mxu0 0
    %158 = vmatpush1.bf16.msra.mxu0 0
    %159 = vmatprep.mubr.bf16.mxu0 0
    %160 = vmatmul.mubr.bf16.gmra.mrb[0].mxu0 %v125
    %v161 = vpop.f32.mrb[0].mxu0
    %v162 = vadd.f32 %v76, %v161
    %v163 = vpop.f32.mrb[0].mxu0
    %v164 = vadd.f32 %v80, %v163
    %v165 = vpop.f32.mrb[0].mxu0
    %v166 = vpop.f32.mrb[0].mxu0
    %167 = vdwg.mxu0
    %168 = vst [vmem:[#allocation2] sm:$0xff] %v162
    %169 = vst [vmem:[#allocation2 + $0x8] sm:$0xff] %v164
    %v170 = vld [vmem:[#allocation8] sm:$0xff]
    %v171 = vld [vmem:[#allocation8 + $0x8] sm:$0xff]
    %v172 = vld [vmem:[#allocation8 + $0x10] sm:$0xff]
    %v173 = vld [vmem:[#allocation8 + $0x18] sm:$0xff]
    %v174 = vld [vmem:[#allocation8 + $0x20] sm:$0xff]
    %v175 = vld [vmem:[#allocation8 + $0x28] sm:$0xff]
    %v176 = vld [vmem:[#allocation8 + $0x30] sm:$0xff]
    %v177 = vld [vmem:[#allocation8 + $0x38] sm:$0xff]
    %v178 = vld [vmem:[#allocation2] ss:$8 sm:$0x3]
    %v187 = vunpack.c.l.b16 %v170
    %v188 = vunpack.c.h.b16 %v170
    %v189 = vunpack.c.l.b16 %v171
    %v190 = vunpack.c.h.b16 %v171
    %v191 = vunpack.c.l.b16 %v172
    %v192 = vunpack.c.h.b16 %v172
    %v193 = vunpack.c.l.b16 %v173
    %v194 = vunpack.c.h.b16 %v173
    %v195 = vunpack.c.l.b16 %v174
    %v196 = vunpack.c.h.b16 %v174
    %v197 = vunpack.c.l.b16 %v175
    %v198 = vunpack.c.h.b16 %v175
    %v199 = vunpack.c.l.b16 %v176
    %v200 = vunpack.c.h.b16 %v176
    %v201 = vunpack.c.l.b16 %v177
    %v202 = vunpack.c.h.b16 %v177
    %v203 = vpack.c.b16 %v189, %v187
    %v204 = vpack.c.b16 %v190, %v188
    %v205 = vpack.c.b16 %v193, %v191
    %v206 = vpack.c.b16 %v194, %v192
    %v207 = vpack.c.b16 %v197, %v195
    %v208 = vpack.c.b16 %v198, %v196
    %v209 = vpack.c.b16 %v201, %v199
    %v210 = vpack.c.b16 %v202, %v200
    %v220 = vsel %vm123, 0, 0
    %222 = vmatprep.subr.bf16.mxu0 %v204
    %223 = vmatpush1.bf16.msra.mxu0 %v203
    %224 = vmatprep.subr.bf16.mxu0 %v206
    %225 = vmatpush1.bf16.msra.mxu0 %v205
    %226 = vmatprep.subr.bf16.mxu0 %v208
    %227 = vmatpush1.bf16.msra.mxu0 %v207
    %228 = vmatprep.subr.bf16.mxu0 %v210
    %229 = vmatpush1.bf16.msra.mxu0 %v209
    %230 = vmatprep.subr.bf16.mxu0 0
    %231 = vmatpush1.bf16.msra.mxu0 0
    %232 = vmatprep.subr.bf16.mxu0 0
    %233 = vmatpush1.bf16.msra.mxu0 0
    %234 = vmatprep.subr.bf16.mxu0 0
    %235 = vmatpush1.bf16.msra.mxu0 0
    %236 = vmatprep.subr.bf16.mxu0 0
    %237 = vmatpush1.bf16.msra.mxu0 0
    %238 = vmatprep.subr.bf16.mxu0 0
    %239 = vmatpush1.bf16.msra.mxu0 0
    %240 = vmatprep.subr.bf16.mxu0 0
    %241 = vmatpush1.bf16.msra.mxu0 0
    %242 = vmatprep.subr.bf16.mxu0 0
    %243 = vmatpush1.bf16.msra.mxu0 0
    %244 = vmatprep.subr.bf16.mxu0 0
    %245 = vmatpush1.bf16.msra.mxu0 0
    %246 = vmatprep.subr.bf16.mxu0 0
    %247 = vmatpush1.bf16.msra.mxu0 0
    %248 = vmatprep.subr.bf16.mxu0 0
    %249 = vmatpush1.bf16.msra.mxu0 0
    %250 = vmatprep.subr.bf16.mxu0 0
    %251 = vmatpush1.bf16.msra.mxu0 0
    %252 = vmatprep.subr.bf16.mxu0 0
    %253 = vmatpush1.bf16.msra.mxu0 0
    %254 = vmatprep.mubr.bf16.mxu0 0
    %255 = vmatmul.mubr.bf16.gmra.mrb[0].mxu0 %v220
    %v256 = vpop.f32.mrb[0].mxu0
    %v257 = vadd.f32 0.0, %v256
    %v258 = vpop.f32.mrb[0].mxu0
    %v259 = vadd.f32 0.0, %v258
    %v260 = vpop.f32.mrb[0].mxu0
    %v261 = vpop.f32.mrb[0].mxu0
    %262 = vdwg.mxu0
    %v265 = vcombine.low %v257, %v259
    %v267 = vunpack.c.l.s4 1966171168
    %v268 = vunpack.c.0.s8 %v267
    %v269 = vlaneseq
    %v270 = vshrl.u32 %v269, 7
    %v271 = vsub.s32 %v268, %v270
    %v272 = vrot.slane %v265, %v271
    %v274 = vunpack.c.l.s4 1966171168
    %v275 = vunpack.c.0.s8 %v274
    %v276 = vlaneseq
    %v277 = vshrl.u32 %v276, 7
    %v278 = vsub.s32 %v275, %v277
    %v279 = vrot.slane %v272, %v278
    %v281 = vadd.f32 %v178, %v279
    %v282 = vmul.f32 %v281, 0.5
    %v283 = vtanh.pop %v282
    %v284 = vadd.f32 %v283, 1.0
    %v285 = vmul.f32 %v284, 0.5
    %v287 = vrot.slane %v281, 1
    %v289 = vtanh.pop %v287
    %290 = vrot.lane.b32.xlu0 %v281, 64
    %v291 = vpop.permute.xlu0 %290
    %v292 = vrot.slane %v291, 1
    %v294 = vmul.f32 %v292, 0.5
    %v295 = vtanh.pop %v294
    %v296 = vadd.f32 %v295, 1.0
    %v297 = vmul.f32 %v296, 0.5
    %v298 = vmul.f32 %v285, 0.0
    %v299 = vmul.f32 %v285, %v289
    %301 = vrot.lane.b32.xlu0 %v299, 64
    %v302 = vpop.permute.xlu0 %301
    %v304 = vadd.f32 %v298, %v302
    %v305 = vtanh.pop %v304
    %307 = vrot.lane.b32.xlu0 %v305, 64
    %v308 = vpop.permute.xlu0 %307
    %v310 = vmul.f32 %v297, %v308
    %vm311 = vcmask 516096
    %312 = vst.msk [vmem:[#allocation9] sm:$0x1] %vm311, %v310
    %s313 = scalar_lea.vmem [#allocation2], 1
    %v314 = vld [vmem:[%s313] ss:$8 sm:$0x3]
    %v315 = vpack.c.bf16 %v310, %v310
    %v317 = vsel %vm123, %v315, 0
    %319 = vmatprep.subr.bf16.mxu0 %v204
    %320 = vmatpush1.bf16.msra.mxu0 %v203
    %321 = vmatprep.subr.bf16.mxu0 %v206
    %322 = vmatpush1.bf16.msra.mxu0 %v205
    %323 = vmatprep.subr.bf16.mxu0 %v208
    %324 = vmatpush1.bf16.msra.mxu0 %v207
    %325 = vmatprep.subr.bf16.mxu0 %v210
    %326 = vmatpush1.bf16.msra.mxu0 %v209
    %327 = vmatprep.subr.bf16.mxu0 0
    %328 = vmatpush1.bf16.msra.mxu0 0
    %329 = vmatprep.subr.bf16.mxu0 0
    %330 = vmatpush1.bf16.msra.mxu0 0
    %331 = vmatprep.subr.bf16.mxu0 0
    %332 = vmatpush1.bf16.msra.mxu0 0
    %333 = vmatprep.subr.bf16.mxu0 0
    %334 = vmatpush1.bf16.msra.mxu0 0
    %335 = vmatprep.subr.bf16.mxu0 0
    %336 = vmatpush1.bf16.msra.mxu0 0
    %337 = vmatprep.subr.bf16.mxu0 0
    %338 = vmatpush1.bf16.msra.mxu0 0
    %339 = vmatprep.subr.bf16.mxu0 0
    %340 = vmatpush1.bf16.msra.mxu0 0
    %341 = vmatprep.subr.bf16.mxu0 0
    %342 = vmatpush1.bf16.msra.mxu0 0
    %343 = vmatprep.subr.bf16.mxu0 0
    %344 = vmatpush1.bf16.msra.mxu0 0
    %345 = vmatprep.subr.bf16.mxu0 0
    %346 = vmatpush1.bf16.msra.mxu0 0
    %347 = vmatprep.subr.bf16.mxu0 0
    %348 = vmatpush1.bf16.msra.mxu0 0
    %349 = vmatprep.subr.bf16.mxu0 0
    %350 = vmatpush1.bf16.msra.mxu0 0
    %351 = vmatprep.mubr.bf16.mxu0 0
    %352 = vmatmul.mubr.bf16.gmra.mrb[0].mxu0 %v317
    %v353 = vpop.f32.mrb[0].mxu0
    %v354 = vadd.f32 0.0, %v353
    %v355 = vpop.f32.mrb[0].mxu0
    %v356 = vadd.f32 0.0, %v355
    %v357 = vpop.f32.mrb[0].mxu0
    %v358 = vpop.f32.mrb[0].mxu0
    %359 = vdwg.mxu0
    %v362 = vcombine.low %v354, %v356
    %v364 = vunpack.c.l.s4 1966171168
    %v365 = vunpack.c.0.s8 %v364
    %v366 = vlaneseq
    %v367 = vshrl.u32 %v366, 7
    %v368 = vsub.s32 %v365, %v367
    %v369 = vrot.slane %v362, %v368
    %v371 = vunpack.c.l.s4 1966171168
    %v372 = vunpack.c.0.s8 %v371
    %v373 = vlaneseq
    %v374 = vshrl.u32 %v373, 7
    %v375 = vsub.s32 %v372, %v374
    %v376 = vrot.slane %v369, %v375
    %v378 = vadd.f32 %v314, %v376
    %v379 = vmul.f32 %v378, 0.5
    %v380 = vtanh.pop %v379
    %v381 = vadd.f32 %v380, 1.0
    %v382 = vmul.f32 %v381, 0.5
    %v384 = vrot.slane %v378, 1
    %v386 = vtanh.pop %v384
    %387 = vrot.lane.b32.xlu0 %v378, 64
    %v388 = vpop.permute.xlu0 %387
    %v389 = vrot.slane %v388, 1
    %v391 = vmul.f32 %v389, 0.5
    %v392 = vtanh.pop %v391
    %v393 = vadd.f32 %v392, 1.0
    %v394 = vmul.f32 %v393, 0.5
    %v395 = vmul.f32 %v382, %v304
    %v396 = vmul.f32 %v382, %v386
    %398 = vrot.lane.b32.xlu0 %v396, 64
    %v399 = vpop.permute.xlu0 %398
    %v401 = vadd.f32 %v395, %v399
    %v402 = vtanh.pop %v401
    %404 = vrot.lane.b32.xlu0 %v402, 64
    %v405 = vpop.permute.xlu0 %404
    %v407 = vmul.f32 %v394, %v405
    %408 = vst.msk [vmem:[#allocation9 + $0x1] sm:$0x1] %vm311, %v407
    %s409 = scalar_lea.vmem [#allocation2], 2
    %v410 = vld [vmem:[%s409] ss:$8 sm:$0x3]
    %v411 = vpack.c.bf16 %v407, %v407
    %v413 = vsel %vm123, %v411, 0
    %415 = vmatprep.subr.bf16.mxu0 %v204
    %416 = vmatpush1.bf16.msra.mxu0 %v203
    %417 = vmatprep.subr.bf16.mxu0 %v206
    %418 = vmatpush1.bf16.msra.mxu0 %v205
    %419 = vmatprep.subr.bf16.mxu0 %v208
    %420 = vmatpush1.bf16.msra.mxu0 %v207
    %421 = vmatprep.subr.bf16.mxu0 %v210
    %422 = vmatpush1.bf16.msra.mxu0 %v209
    %423 = vmatprep.subr.bf16.mxu0 0
    %424 = vmatpush1.bf16.msra.mxu0 0
    %425 = vmatprep.subr.bf16.mxu0 0
    %426 = vmatpush1.bf16.msra.mxu0 0
    %427 = vmatprep.subr.bf16.mxu0 0
    %428 = vmatpush1.bf16.msra.mxu0 0
    %429 = vmatprep.subr.bf16.mxu0 0
    %430 = vmatpush1.bf16.msra.mxu0 0
    %431 = vmatprep.subr.bf16.mxu0 0
    %432 = vmatpush1.bf16.msra.mxu0 0
    %433 = vmatprep.subr.bf16.mxu0 0
    %434 = vmatpush1.bf16.msra.mxu0 0
    %435 = vmatprep.subr.bf16.mxu0 0
    %436 = vmatpush1.bf16.msra.mxu0 0
    %437 = vmatprep.subr.bf16.mxu0 0
    %438 = vmatpush1.bf16.msra.mxu0 0
    %439 = vmatprep.subr.bf16.mxu0 0
    %440 = vmatpush1.bf16.msra.mxu0 0
    %441 = vmatprep.subr.bf16.mxu0 0
    %442 = vmatpush1.bf16.msra.mxu0 0
    %443 = vmatprep.subr.bf16.mxu0 0
    %444 = vmatpush1.bf16.msra.mxu0 0
    %445 = vmatprep.subr.bf16.mxu0 0
    %446 = vmatpush1.bf16.msra.mxu0 0
    %447 = vmatprep.mubr.bf16.mxu0 0
    %448 = vmatmul.mubr.bf16.gmra.mrb[0].mxu0 %v413
    %v449 = vpop.f32.mrb[0].mxu0
    %v450 = vadd.f32 0.0, %v449
    %v451 = vpop.f32.mrb[0].mxu0
    %v452 = vadd.f32 0.0, %v451
    %v453 = vpop.f32.mrb[0].mxu0
    %v454 = vpop.f32.mrb[0].mxu0
    %455 = vdwg.mxu0
    %v458 = vcombine.low %v450, %v452
    %v460 = vunpack.c.l.s4 1966171168
    %v461 = vunpack.c.0.s8 %v460
    %v462 = vlaneseq
    %v463 = vshrl.u32 %v462, 7
    %v464 = vsub.s32 %v461, %v463
    %v465 = vrot.slane %v458, %v464
    %v467 = vunpack.c.l.s4 1966171168
    %v468 = vunpack.c.0.s8 %v467
    %v469 = vlaneseq
    %v470 = vshrl.u32 %v469, 7
    %v471 = vsub.s32 %v468, %v470
    %v472 = vrot.slane %v465, %v471
    %v474 = vadd.f32 %v410, %v472
    %v475 = vmul.f32 %v474, 0.5
    %v476 = vtanh.pop %v475
    %v477 = vadd.f32 %v476, 1.0
    %v478 = vmul.f32 %v477, 0.5
    %v480 = vrot.slane %v474, 1
    %v482 = vtanh.pop %v480
    %483 = vrot.lane.b32.xlu0 %v474, 64
    %v484 = vpop.permute.xlu0 %483
    %v485 = vrot.slane %v484, 1
    %v487 = vmul.f32 %v485, 0.5
    %v488 = vtanh.pop %v487
    %v489 = vadd.f32 %v488, 1.0
    %v490 = vmul.f32 %v489, 0.5
    %v491 = vmul.f32 %v478, %v401
    %v492 = vmul.f32 %v478, %v482
    %494 = vrot.lane.b32.xlu0 %v492, 64
    %v495 = vpop.permute.xlu0 %494
    %v497 = vadd.f32 %v491, %v495
    %v498 = vtanh.pop %v497
    %500 = vrot.lane.b32.xlu0 %v498, 64
    %v501 = vpop.permute.xlu0 %500
    %v503 = vmul.f32 %v490, %v501
    %504 = vst.msk [vmem:[#allocation9 + $0x2] sm:$0x1] %vm311, %v503
    %s505 = scalar_lea.vmem [#allocation2], 3
    %v506 = vld [vmem:[%s505] ss:$8 sm:$0x3]
    %v507 = vpack.c.bf16 %v503, %v503
    %v509 = vsel %vm123, %v507, 0
    %511 = vmatprep.subr.bf16.mxu0 %v204
    %512 = vmatpush1.bf16.msra.mxu0 %v203
    %513 = vmatprep.subr.bf16.mxu0 %v206
    %514 = vmatpush1.bf16.msra.mxu0 %v205
    %515 = vmatprep.subr.bf16.mxu0 %v208
    %516 = vmatpush1.bf16.msra.mxu0 %v207
    %517 = vmatprep.subr.bf16.mxu0 %v210
    %518 = vmatpush1.bf16.msra.mxu0 %v209
    %519 = vmatprep.subr.bf16.mxu0 0
    %520 = vmatpush1.bf16.msra.mxu0 0
    %521 = vmatprep.subr.bf16.mxu0 0
    %522 = vmatpush1.bf16.msra.mxu0 0
    %523 = vmatprep.subr.bf16.mxu0 0
    %524 = vmatpush1.bf16.msra.mxu0 0
    %525 = vmatprep.subr.bf16.mxu0 0
    %526 = vmatpush1.bf16.msra.mxu0 0
    %527 = vmatprep.subr.bf16.mxu0 0
    %528 = vmatpush1.bf16.msra.mxu0 0
    %529 = vmatprep.subr.bf16.mxu0 0
    %530 = vmatpush1.bf16.msra.mxu0 0
    %531 = vmatprep.subr.bf16.mxu0 0
    %532 = vmatpush1.bf16.msra.mxu0 0
    %533 = vmatprep.subr.bf16.mxu0 0
    %534 = vmatpush1.bf16.msra.mxu0 0
    %535 = vmatprep.subr.bf16.mxu0 0
    %536 = vmatpush1.bf16.msra.mxu0 0
    %537 = vmatprep.subr.bf16.mxu0 0
    %538 = vmatpush1.bf16.msra.mxu0 0
    %539 = vmatprep.subr.bf16.mxu0 0
    %540 = vmatpush1.bf16.msra.mxu0 0
    %541 = vmatprep.subr.bf16.mxu0 0
    %542 = vmatpush1.bf16.msra.mxu0 0
    %543 = vmatprep.mubr.bf16.mxu0 0
    %544 = vmatmul.mubr.bf16.gmra.mrb[0].mxu0 %v509
    %v545 = vpop.f32.mrb[0].mxu0
    %v546 = vadd.f32 0.0, %v545
    %v547 = vpop.f32.mrb[0].mxu0
    %v548 = vadd.f32 0.0, %v547
    %v549 = vpop.f32.mrb[0].mxu0
    %v550 = vpop.f32.mrb[0].mxu0
    %551 = vdwg.mxu0
    %v554 = vcombine.low %v546, %v548
    %v556 = vunpack.c.l.s4 1966171168
    %v557 = vunpack.c.0.s8 %v556
    %v558 = vlaneseq
    %v559 = vshrl.u32 %v558, 7
    %v560 = vsub.s32 %v557, %v559
    %v561 = vrot.slane %v554, %v560
    %v563 = vunpack.c.l.s4 1966171168
    %v564 = vunpack.c.0.s8 %v563
    %v565 = vlaneseq
    %v566 = vshrl.u32 %v565, 7
    %v567 = vsub.s32 %v564, %v566
    %v568 = vrot.slane %v561, %v567
    %v570 = vadd.f32 %v506, %v568
    %v571 = vmul.f32 %v570, 0.5
    %v572 = vtanh.pop %v571
    %v573 = vadd.f32 %v572, 1.0
    %v574 = vmul.f32 %v573, 0.5
    %v576 = vrot.slane %v570, 1
    %v578 = vtanh.pop %v576
    %579 = vrot.lane.b32.xlu0 %v570, 64
    %v580 = vpop.permute.xlu0 %579
    %v581 = vrot.slane %v580, 1
    %v583 = vmul.f32 %v581, 0.5
    %v584 = vtanh.pop %v583
    %v585 = vadd.f32 %v584, 1.0
    %v586 = vmul.f32 %v585, 0.5
    %v587 = vmul.f32 %v574, %v497
    %v588 = vmul.f32 %v574, %v578
    %590 = vrot.lane.b32.xlu0 %v588, 64
    %v591 = vpop.permute.xlu0 %590
    %v593 = vadd.f32 %v587, %v591
    %v594 = vtanh.pop %v593
    %596 = vrot.lane.b32.xlu0 %v594, 64
    %v597 = vpop.permute.xlu0 %596
    %v599 = vmul.f32 %v586, %v597
    %600 = vst.msk [vmem:[#allocation9 + $0x3] sm:$0x1] %vm311, %v599
    %s601 = scalar_lea.vmem [#allocation2], 4
    %v602 = vld [vmem:[%s601] ss:$8 sm:$0x3]
    %v603 = vpack.c.bf16 %v599, %v599
    %v605 = vsel %vm123, %v603, 0
    %607 = vmatprep.subr.bf16.mxu0 %v204
    %608 = vmatpush1.bf16.msra.mxu0 %v203
    %609 = vmatprep.subr.bf16.mxu0 %v206
    %610 = vmatpush1.bf16.msra.mxu0 %v205
    %611 = vmatprep.subr.bf16.mxu0 %v208
    %612 = vmatpush1.bf16.msra.mxu0 %v207
    %613 = vmatprep.subr.bf16.mxu0 %v210
    %614 = vmatpush1.bf16.msra.mxu0 %v209
    %615 = vmatprep.subr.bf16.mxu0 0
    %616 = vmatpush1.bf16.msra.mxu0 0
    %617 = vmatprep.subr.bf16.mxu0 0
    %618 = vmatpush1.bf16.msra.mxu0 0
    %619 = vmatprep.subr.bf16.mxu0 0
    %620 = vmatpush1.bf16.msra.mxu0 0
    %621 = vmatprep.subr.bf16.mxu0 0
    %622 = vmatpush1.bf16.msra.mxu0 0
    %623 = vmatprep.subr.bf16.mxu0 0
    %624 = vmatpush1.bf16.msra.mxu0 0
    %625 = vmatprep.subr.bf16.mxu0 0
    %626 = vmatpush1.bf16.msra.mxu0 0
    %627 = vmatprep.subr.bf16.mxu0 0
    %628 = vmatpush1.bf16.msra.mxu0 0
    %629 = vmatprep.subr.bf16.mxu0 0
    %630 = vmatpush1.bf16.msra.mxu0 0
    %631 = vmatprep.subr.bf16.mxu0 0
    %632 = vmatpush1.bf16.msra.mxu0 0
    %633 = vmatprep.subr.bf16.mxu0 0
    %634 = vmatpush1.bf16.msra.mxu0 0
    %635 = vmatprep.subr.bf16.mxu0 0
    %636 = vmatpush1.bf16.msra.mxu0 0
    %637 = vmatprep.subr.bf16.mxu0 0
    %638 = vmatpush1.bf16.msra.mxu0 0
    %639 = vmatprep.mubr.bf16.mxu0 0
    %640 = vmatmul.mubr.bf16.gmra.mrb[0].mxu0 %v605
    %v641 = vpop.f32.mrb[0].mxu0
    %v642 = vadd.f32 0.0, %v641
    %v643 = vpop.f32.mrb[0].mxu0
    %v644 = vadd.f32 0.0, %v643
    %v645 = vpop.f32.mrb[0].mxu0
    %v646 = vpop.f32.mrb[0].mxu0
    %647 = vdwg.mxu0
    %v650 = vcombine.low %v642, %v644
    %v652 = vunpack.c.l.s4 1966171168
    %v653 = vunpack.c.0.s8 %v652
    %v654 = vlaneseq
    %v655 = vshrl.u32 %v654, 7
    %v656 = vsub.s32 %v653, %v655
    %v657 = vrot.slane %v650, %v656
    %v659 = vunpack.c.l.s4 1966171168
    %v660 = vunpack.c.0.s8 %v659
    %v661 = vlaneseq
    %v662 = vshrl.u32 %v661, 7
    %v663 = vsub.s32 %v660, %v662
    %v664 = vrot.slane %v657, %v663
    %v666 = vadd.f32 %v602, %v664
    %v667 = vmul.f32 %v666, 0.5
    %v668 = vtanh.pop %v667
    %v669 = vadd.f32 %v668, 1.0
    %v670 = vmul.f32 %v669, 0.5
    %v672 = vrot.slane %v666, 1
    %v674 = vtanh.pop %v672
    %675 = vrot.lane.b32.xlu0 %v666, 64
    %v676 = vpop.permute.xlu0 %675
    %v677 = vrot.slane %v676, 1
    %v679 = vmul.f32 %v677, 0.5
    %v680 = vtanh.pop %v679
    %v681 = vadd.f32 %v680, 1.0
    %v682 = vmul.f32 %v681, 0.5
    %v683 = vmul.f32 %v670, %v593
    %v684 = vmul.f32 %v670, %v674
    %686 = vrot.lane.b32.xlu0 %v684, 64
    %v687 = vpop.permute.xlu0 %686
    %v689 = vadd.f32 %v683, %v687
    %v690 = vtanh.pop %v689
    %692 = vrot.lane.b32.xlu0 %v690, 64
    %v693 = vpop.permute.xlu0 %692
    %v695 = vmul.f32 %v682, %v693
    %696 = vst.msk [vmem:[#allocation9 + $0x4] sm:$0x1] %vm311, %v695
    %s697 = scalar_lea.vmem [#allocation2], 5
    %v698 = vld [vmem:[%s697] ss:$8 sm:$0x3]
    %v699 = vpack.c.bf16 %v695, %v695
    %v701 = vsel %vm123, %v699, 0
    %703 = vmatprep.subr.bf16.mxu0 %v204
    %704 = vmatpush1.bf16.msra.mxu0 %v203
    %705 = vmatprep.subr.bf16.mxu0 %v206
    %706 = vmatpush1.bf16.msra.mxu0 %v205
    %707 = vmatprep.subr.bf16.mxu0 %v208
    %708 = vmatpush1.bf16.msra.mxu0 %v207
    %709 = vmatprep.subr.bf16.mxu0 %v210
    %710 = vmatpush1.bf16.msra.mxu0 %v209
    %711 = vmatprep.subr.bf16.mxu0 0
    %712 = vmatpush1.bf16.msra.mxu0 0
    %713 = vmatprep.subr.bf16.mxu0 0
    %714 = vmatpush1.bf16.msra.mxu0 0
    %715 = vmatprep.subr.bf16.mxu0 0
    %716 = vmatpush1.bf16.msra.mxu0 0
    %717 = vmatprep.subr.bf16.mxu0 0
    %718 = vmatpush1.bf16.msra.mxu0 0
    %719 = vmatprep.subr.bf16.mxu0 0
    %720 = vmatpush1.bf16.msra.mxu0 0
    %721 = vmatprep.subr.bf16.mxu0 0
    %722 = vmatpush1.bf16.msra.mxu0 0
    %723 = vmatprep.subr.bf16.mxu0 0
    %724 = vmatpush1.bf16.msra.mxu0 0
    %725 = vmatprep.subr.bf16.mxu0 0
    %726 = vmatpush1.bf16.msra.mxu0 0
    %727 = vmatprep.subr.bf16.mxu0 0
    %728 = vmatpush1.bf16.msra.mxu0 0
    %729 = vmatprep.subr.bf16.mxu0 0
    %730 = vmatpush1.bf16.msra.mxu0 0
    %731 = vmatprep.subr.bf16.mxu0 0
    %732 = vmatpush1.bf16.msra.mxu0 0
    %733 = vmatprep.subr.bf16.mxu0 0
    %734 = vmatpush1.bf16.msra.mxu0 0
    %735 = vmatprep.mubr.bf16.mxu0 0
    %736 = vmatmul.mubr.bf16.gmra.mrb[0].mxu0 %v701
    %v737 = vpop.f32.mrb[0].mxu0
    %v738 = vadd.f32 0.0, %v737
    %v739 = vpop.f32.mrb[0].mxu0
    %v740 = vadd.f32 0.0, %v739
    %v741 = vpop.f32.mrb[0].mxu0
    %v742 = vpop.f32.mrb[0].mxu0
    %743 = vdwg.mxu0
    %v746 = vcombine.low %v738, %v740
    %v748 = vunpack.c.l.s4 1966171168
    %v749 = vunpack.c.0.s8 %v748
    %v750 = vlaneseq
    %v751 = vshrl.u32 %v750, 7
    %v752 = vsub.s32 %v749, %v751
    %v753 = vrot.slane %v746, %v752
    %v755 = vunpack.c.l.s4 1966171168
    %v756 = vunpack.c.0.s8 %v755
    %v757 = vlaneseq
    %v758 = vshrl.u32 %v757, 7
    %v759 = vsub.s32 %v756, %v758
    %v760 = vrot.slane %v753, %v759
    %v762 = vadd.f32 %v698, %v760
    %v763 = vmul.f32 %v762, 0.5
    %v764 = vtanh.pop %v763
    %v765 = vadd.f32 %v764, 1.0
    %v766 = vmul.f32 %v765, 0.5
    %v768 = vrot.slane %v762, 1
    %v770 = vtanh.pop %v768
    %771 = vrot.lane.b32.xlu0 %v762, 64
    %v772 = vpop.permute.xlu0 %771
    %v773 = vrot.slane %v772, 1
    %v775 = vmul.f32 %v773, 0.5
    %v776 = vtanh.pop %v775
    %v777 = vadd.f32 %v776, 1.0
    %v778 = vmul.f32 %v777, 0.5
    %v779 = vmul.f32 %v766, %v689
    %v780 = vmul.f32 %v766, %v770
    %782 = vrot.lane.b32.xlu0 %v780, 64
    %v783 = vpop.permute.xlu0 %782
    %v785 = vadd.f32 %v779, %v783
    %v786 = vtanh.pop %v785
    %788 = vrot.lane.b32.xlu0 %v786, 64
    %v789 = vpop.permute.xlu0 %788
    %v791 = vmul.f32 %v778, %v789
    %792 = vst.msk [vmem:[#allocation9 + $0x5] sm:$0x1] %vm311, %v791
    %s793 = scalar_lea.vmem [#allocation2], 6
    %v794 = vld [vmem:[%s793] ss:$8 sm:$0x3]
    %v795 = vpack.c.bf16 %v791, %v791
    %v797 = vsel %vm123, %v795, 0
    %799 = vmatprep.subr.bf16.mxu0 %v204
    %800 = vmatpush1.bf16.msra.mxu0 %v203
    %801 = vmatprep.subr.bf16.mxu0 %v206
    %802 = vmatpush1.bf16.msra.mxu0 %v205
    %803 = vmatprep.subr.bf16.mxu0 %v208
    %804 = vmatpush1.bf16.msra.mxu0 %v207
    %805 = vmatprep.subr.bf16.mxu0 %v210
    %806 = vmatpush1.bf16.msra.mxu0 %v209
    %807 = vmatprep.subr.bf16.mxu0 0
    %808 = vmatpush1.bf16.msra.mxu0 0
    %809 = vmatprep.subr.bf16.mxu0 0
    %810 = vmatpush1.bf16.msra.mxu0 0
    %811 = vmatprep.subr.bf16.mxu0 0
    %812 = vmatpush1.bf16.msra.mxu0 0
    %813 = vmatprep.subr.bf16.mxu0 0
    %814 = vmatpush1.bf16.msra.mxu0 0
    %815 = vmatprep.subr.bf16.mxu0 0
    %816 = vmatpush1.bf16.msra.mxu0 0
    %817 = vmatprep.subr.bf16.mxu0 0
    %818 = vmatpush1.bf16.msra.mxu0 0
    %819 = vmatprep.subr.bf16.mxu0 0
    %820 = vmatpush1.bf16.msra.mxu0 0
    %821 = vmatprep.subr.bf16.mxu0 0
    %822 = vmatpush1.bf16.msra.mxu0 0
    %823 = vmatprep.subr.bf16.mxu0 0
    %824 = vmatpush1.bf16.msra.mxu0 0
    %825 = vmatprep.subr.bf16.mxu0 0
    %826 = vmatpush1.bf16.msra.mxu0 0
    %827 = vmatprep.subr.bf16.mxu0 0
    %828 = vmatpush1.bf16.msra.mxu0 0
    %829 = vmatprep.subr.bf16.mxu0 0
    %830 = vmatpush1.bf16.msra.mxu0 0
    %831 = vmatprep.mubr.bf16.mxu0 0
    %832 = vmatmul.mubr.bf16.gmra.mrb[0].mxu0 %v797
    %v833 = vpop.f32.mrb[0].mxu0
    %v834 = vadd.f32 0.0, %v833
    %v835 = vpop.f32.mrb[0].mxu0
    %v836 = vadd.f32 0.0, %v835
    %v837 = vpop.f32.mrb[0].mxu0
    %v838 = vpop.f32.mrb[0].mxu0
    %839 = vdwg.mxu0
    %v842 = vcombine.low %v834, %v836
    %v844 = vunpack.c.l.s4 1966171168
    %v845 = vunpack.c.0.s8 %v844
    %v846 = vlaneseq
    %v847 = vshrl.u32 %v846, 7
    %v848 = vsub.s32 %v845, %v847
    %v849 = vrot.slane %v842, %v848
    %v851 = vunpack.c.l.s4 1966171168
    %v852 = vunpack.c.0.s8 %v851
    %v853 = vlaneseq
    %v854 = vshrl.u32 %v853, 7
    %v855 = vsub.s32 %v852, %v854
    %v856 = vrot.slane %v849, %v855
    %v858 = vadd.f32 %v794, %v856
    %v859 = vmul.f32 %v858, 0.5
    %v860 = vtanh.pop %v859
    %v861 = vadd.f32 %v860, 1.0
    %v862 = vmul.f32 %v861, 0.5
    %v864 = vrot.slane %v858, 1
    %v866 = vtanh.pop %v864
    %867 = vrot.lane.b32.xlu0 %v858, 64
    %v868 = vpop.permute.xlu0 %867
    %v869 = vrot.slane %v868, 1
    %v871 = vmul.f32 %v869, 0.5
    %v872 = vtanh.pop %v871
    %v873 = vadd.f32 %v872, 1.0
    %v874 = vmul.f32 %v873, 0.5
    %v875 = vmul.f32 %v862, %v785
    %v876 = vmul.f32 %v862, %v866
    %878 = vrot.lane.b32.xlu0 %v876, 64
    %v879 = vpop.permute.xlu0 %878
    %v881 = vadd.f32 %v875, %v879
    %v882 = vtanh.pop %v881
    %884 = vrot.lane.b32.xlu0 %v882, 64
    %v885 = vpop.permute.xlu0 %884
    %v887 = vmul.f32 %v874, %v885
    %888 = vst.msk [vmem:[#allocation9 + $0x6] sm:$0x1] %vm311, %v887
    %s889 = scalar_lea.vmem [#allocation2], 7
    %v890 = vld [vmem:[%s889] ss:$8 sm:$0x3]
    %v891 = vpack.c.bf16 %v887, %v887
    %v893 = vsel %vm123, %v891, 0
    %895 = vmatprep.subr.bf16.mxu0 %v204
    %896 = vmatpush1.bf16.msra.mxu0 %v203
    %897 = vmatprep.subr.bf16.mxu0 %v206
    %898 = vmatpush1.bf16.msra.mxu0 %v205
    %899 = vmatprep.subr.bf16.mxu0 %v208
    %900 = vmatpush1.bf16.msra.mxu0 %v207
    %901 = vmatprep.subr.bf16.mxu0 %v210
    %902 = vmatpush1.bf16.msra.mxu0 %v209
    %903 = vmatprep.subr.bf16.mxu0 0
    %904 = vmatpush1.bf16.msra.mxu0 0
    %905 = vmatprep.subr.bf16.mxu0 0
    %906 = vmatpush1.bf16.msra.mxu0 0
    %907 = vmatprep.subr.bf16.mxu0 0
    %908 = vmatpush1.bf16.msra.mxu0 0
    %909 = vmatprep.subr.bf16.mxu0 0
    %910 = vmatpush1.bf16.msra.mxu0 0
    %911 = vmatprep.subr.bf16.mxu0 0
    %912 = vmatpush1.bf16.msra.mxu0 0
    %913 = vmatprep.subr.bf16.mxu0 0
    %914 = vmatpush1.bf16.msra.mxu0 0
    %915 = vmatprep.subr.bf16.mxu0 0
    %916 = vmatpush1.bf16.msra.mxu0 0
    %917 = vmatprep.subr.bf16.mxu0 0
    %918 = vmatpush1.bf16.msra.mxu0 0
    %919 = vmatprep.subr.bf16.mxu0 0
    %920 = vmatpush1.bf16.msra.mxu0 0
    %921 = vmatprep.subr.bf16.mxu0 0
    %922 = vmatpush1.bf16.msra.mxu0 0
    %923 = vmatprep.subr.bf16.mxu0 0
    %924 = vmatpush1.bf16.msra.mxu0 0
    %925 = vmatprep.subr.bf16.mxu0 0
    %926 = vmatpush1.bf16.msra.mxu0 0
    %927 = vmatprep.mubr.bf16.mxu0 0
    %928 = vmatmul.mubr.bf16.gmra.mrb[0].mxu0 %v893
    %v929 = vpop.f32.mrb[0].mxu0
    %v930 = vadd.f32 0.0, %v929
    %v931 = vpop.f32.mrb[0].mxu0
    %v932 = vadd.f32 0.0, %v931
    %v933 = vpop.f32.mrb[0].mxu0
    %v934 = vpop.f32.mrb[0].mxu0
    %935 = vdwg.mxu0
    %v938 = vcombine.low %v930, %v932
    %v940 = vunpack.c.l.s4 1966171168
    %v941 = vunpack.c.0.s8 %v940
    %v942 = vlaneseq
    %v943 = vshrl.u32 %v942, 7
    %v944 = vsub.s32 %v941, %v943
    %v945 = vrot.slane %v938, %v944
    %v947 = vunpack.c.l.s4 1966171168
    %v948 = vunpack.c.0.s8 %v947
    %v949 = vlaneseq
    %v950 = vshrl.u32 %v949, 7
    %v951 = vsub.s32 %v948, %v950
    %v952 = vrot.slane %v945, %v951
    %v954 = vadd.f32 %v890, %v952
    %v955 = vmul.f32 %v954, 0.5
    %v956 = vtanh.pop %v955
    %v957 = vadd.f32 %v956, 1.0
    %v958 = vmul.f32 %v957, 0.5
    %v960 = vrot.slane %v954, 1
    %v962 = vtanh.pop %v960
    %963 = vrot.lane.b32.xlu0 %v954, 64
    %v964 = vpop.permute.xlu0 %963
    %v965 = vrot.slane %v964, 1
    %v967 = vmul.f32 %v965, 0.5
    %v968 = vtanh.pop %v967
    %v969 = vadd.f32 %v968, 1.0
    %v970 = vmul.f32 %v969, 0.5
    %v971 = vmul.f32 %v958, %v881
    %v972 = vmul.f32 %v958, %v962
    %974 = vrot.lane.b32.xlu0 %v972, 64
    %v975 = vpop.permute.xlu0 %974
    %v977 = vadd.f32 %v971, %v975
    %v978 = vtanh.pop %v977
    %980 = vrot.lane.b32.xlu0 %v978, 64
    %v981 = vpop.permute.xlu0 %980
    %v983 = vmul.f32 %v970, %v981
    %984 = vst.msk [vmem:[#allocation9 + $0x7] sm:$0x1] %vm311, %v983
    %985 = vst.msk [vmem:[#allocation10] sm:$0x1] %vm311, %v983
    %v987 = vlaneseq
    %v988 = vshrl.u32 %v987, 7
    %v989 = vsub.s32 0, %v988
    %v990 = vrot.slane %v977, %v989
    %991 = vrot.lane.b32.xlu0 %v990, 64
    %v992 = vpop.permute.xlu0 %991
    %994 = vst.msk [vmem:[#allocation12] sm:$0x1] %vm311, %v992
    // Predicated region
    $region30: #{tpu_custom_call.1} parent=1 // pred_check
      _
    $region31: #{tpu_custom_call.1} parent=1 // pred_check_branch
      %996 = sbr.rel (0) target = $region33
    $region32: #{tpu_custom_call.1} parent=1 // pred_region
      %s998 = ssub.s32 128, 128
      %999 = vsyncadd [#allocation5], %s998
      %s1001 = sshll.u32 [#allocation9], 4
      %s1002 = int_to_ptr.vmem [resolvable:$true] %s1001
      %1004 = dma.vmem_to_hbm [thread:$0]  %s1002, 128, %s4, [#allocation5]
    $region33: #{tpu_custom_call.1} parent=1 // pred_fallthru
      _
    // Predicated region
    $region34: #{tpu_custom_call.1} parent=1 // pred_check
      _
    $region35: #{tpu_custom_call.1} parent=1 // pred_check_branch
      %1006 = sbr.rel (0) target = $region37
    $region36: #{tpu_custom_call.1} parent=1 // pred_region
      %s1008 = ssub.s32 16, 16
      %1009 = vsyncadd [#allocation11], %s1008
      %s1011 = sshll.u32 [#allocation10], 4
      %s1012 = int_to_ptr.vmem [resolvable:$true] %s1011
      %1014 = dma.vmem_to_hbm [thread:$0]  %s1012, 16, %s5, [#allocation11]
    $region37: #{tpu_custom_call.1} parent=1 // pred_fallthru
      _
    // Predicated region
    $region38: #{tpu_custom_call.1} parent=1 // pred_check
      _
    $region39: #{tpu_custom_call.1} parent=1 // pred_check_branch
      %1016 = sbr.rel (0) target = $region41
    $region40: #{tpu_custom_call.1} parent=1 // pred_region
      %s1018 = ssub.s32 16, 16
      %1019 = vsyncadd [#allocation11], %s1018
      %s1021 = sshll.u32 [#allocation12], 4
      %s1022 = int_to_ptr.vmem [resolvable:$true] %s1021
      %1024 = dma.vmem_to_hbm [thread:$0]  %s1022, 16, %s6, [#allocation11]
    $region41: #{tpu_custom_call.1} parent=1 // pred_fallthru
      _
    // Predicated region
    $region42: #{tpu_custom_call.1} parent=1 // pred_check
      _
    $region43: #{tpu_custom_call.1} parent=1 // pred_check_branch
      %1026 = sbr.rel (0) target = $region45
    $region44: #{tpu_custom_call.1} parent=1 // pred_region
      %1027 = dma.done [#allocation5], 128
    $region45: #{tpu_custom_call.1} parent=1 // pred_fallthru
      _
    // Predicated region
    $region46: #{tpu_custom_call.1} parent=1 // pred_check
      _
    $region47: #{tpu_custom_call.1} parent=1 // pred_check_branch
      %1029 = sbr.rel (0) target = $region49
    $region48: #{tpu_custom_call.1} parent=1 // pred_region
      %1030 = dma.done [#allocation11], 16
    $region49: #{tpu_custom_call.1} parent=1 // pred_fallthru
      _
    // Predicated region
    $region50: #{tpu_custom_call.1} parent=1 // pred_check
      _
    $region51: #{tpu_custom_call.1} parent=1 // pred_check_branch
      %1032 = sbr.rel (0) target = $region53
    $region52: #{tpu_custom_call.1} parent=1 // pred_region
      %1033 = dma.done [#allocation11], 16
    $region53: #{tpu_custom_call.1} parent=1 // pred_fallthru
      _
    %1034 = vsyncpa [#allocation4], 1
    %1035 = vsyncpa [#allocation7], 1
    %1036 = vsyncpa [#allocation5], 1
    %1037 = vsyncpa [#allocation11], 1

</llo_original>
